<compile_context>
chip_gen: v6e
topology: v6e:2x2x1
jax: 0.10.0
libtpu: 0.0.40
codegen_flags: <defaults>
</compile_context>

<pallas_src>
import numpy as np
import jax
import jax.numpy as jnp
from jax import lax
from jax.experimental import pallas as pl
from jax.experimental.pallas import tpu as pltpu

_HI = jax.lax.Precision.HIGHEST
_CP = 8  # padded class / logit width inside the kernel (num_classes - 1 = 7 -> 8)


def _decoder_kernel(x_ref, wxi_ref, bi_ref, wfused_ref, bfused_ref,
                    wce_ref, start_ref, fb_ref,
                    dists_ref, commits_ref,
                    xproj_sc):
    T = x_ref.shape[0]
    H = wfused_ref.shape[0]
    CP = dists_ref.shape[1]
    SIXH = 6 * H

    # Hoisted input projection for ALL timesteps: one MXU push, (T, 6H).
    xproj_sc[...] = (jnp.dot(x_ref[...], wxi_ref[...],
                             preferred_element_type=jnp.float32) + bi_ref[...])

    # Loop-invariant operands read ONCE; values stay vreg-resident across the
    # fully static unrolled loop below (no re-issued VMEM loads per step).
    wfused = wfused_ref[...]          # (H, CP + 5H)
    bfused = bfused_ref[...]          # (1, CP + 5H)
    wce = wce_ref[...]                # (CP, 6H + CP); lane 6H = commit count
    fb = fb_ref[...]                  # (1, 6H)   = obj_embed[1] @ Wembed (folded)

    # initial_state is None -> h = 0, mem = 0; hence state projection = bias.
    mem = jnp.zeros((1, H), jnp.float32)
    stproj = bfused[:, CP:]           # (1, 5H) == reordered state bias
    eproj = start_ref[...]            # (1, 6H) == obj_embed['start'] @ Wembed

    row_ids = lax.broadcasted_iota(jnp.int32, (T, CP), 0)
    dists_acc = jnp.zeros((T, CP), jnp.float32)

    for t in range(T):                # static unrolled loop, static slices
        proj_in = xproj_sc[t:t + 1, :] + eproj                  # (1, 6H)

        # Gate-reordered layout: [ig fg og hg mi | hp]; mi columns pre-scaled
        # by 2 so tanh(z) == 2*sigmoid(2z) - 1 -> one EUP sigmoid launch.
        sig = jax.nn.sigmoid(proj_in[:, :5 * H] + stproj)       # (1, 5H)
        ig = sig[:, 0 * H:1 * H]
        fg = sig[:, 1 * H:2 * H]
        og = sig[:, 2 * H:3 * H]
        hg = sig[:, 3 * H:4 * H]
        mi = 2.0 * sig[:, 4 * H:5 * H] - 1.0                    # == tanh(mi_pre)
        mem = ig * mi + fg * mem
        h = og * jnp.tanh(mem)
        # highway
        h = hg * h + (1.0 - hg) * proj_in[:, 5 * H:6 * H]
        # (eval mode: recurrent dropout mask is computed but never applied)

        # One fused matmul: logits for step t AND state projection for t+1.
        fused = (jnp.dot(h, wfused, preferred_element_type=jnp.float32)
                 + bfused)                                      # (1, CP + 5H)
        pred = fused[:, :CP]
        stproj = fused[:, CP:]

        # sigmoid(pred) > 0.5  <=>  pred > 0 ; padded logit bias is -1e9 -> 0.
        commit = (pred > 0.0).astype(jnp.float32)               # (1, CP)

        # Accumulate logits into a vreg-resident (T, CP) tile (single store
        # at the end); this is off the serial chain.
        dists_acc = jnp.where(row_ids == t, pred, dists_acc)

        # Feedback: commit @ wce emits the folded embedding projection AND the
        # commit count in an extra lane -> no cross-lane reduce on the chain.
        fbk = jnp.dot(commit, wce, preferred_element_type=jnp.float32)  # (1, 6H+CP)
        any_pos = fbk[:, SIXH:SIXH + 1] > 0.0
        eproj = jnp.where(any_pos, fbk[:, :SIXH], fb)

    dists_ref[...] = dists_acc
    commits_ref[...] = (dists_acc > 0.0).astype(jnp.float32)


def _prepare_inputs(x_seq, params):
    """Param-prep: gate reorder + mi-block 2x scale, class padding, fusion, embed fold."""
    H = params["ws"].shape[0]
    Cm1 = params["wout"].shape[1]
    emb = params["emb"].astype(jnp.float32)

    def blk(order):
        return np.concatenate([np.arange(b * H, (b + 1) * H) for b in order])

    # original column blocks: input [ig fg mi og hg hp], state [ig fg mi og hg]
    perm_in = blk([0, 1, 3, 4, 2, 5])   # -> [ig fg og hg mi hp]
    perm_st = blk([0, 1, 3, 4, 2])      # -> [ig fg og hg mi]

    # scale the mi block (columns 4H:5H after the permute) by 2 so the kernel
    # can recover tanh(z) as 2*sigmoid(2z) - 1 with a single sigmoid launch
    scale_in = np.ones((6 * H,), np.float32)
    scale_in[4 * H:5 * H] = 2.0
    scale_st = np.ones((5 * H,), np.float32)
    scale_st[4 * H:5 * H] = 2.0

    wxi_r = params["wxi"][:, perm_in] * scale_in[None, :]
    wei_r = params["wei"][:, perm_in] * scale_in[None, :]
    bi_r = (params["bi"][perm_in] * scale_in)[None, :]
    ws_r = params["ws"][:, perm_st] * scale_st[None, :]
    bs_r = (params["bs"][perm_st] * scale_st)[None, :]

    # pad output head to _CP lanes; padded logit bias very negative -> never fires
    wout_p = jnp.zeros((H, _CP), jnp.float32).at[:, :Cm1].set(params["wout"])
    bout_p = jnp.full((1, _CP), -1e9, jnp.float32).at[0, :Cm1].set(params["bout"])

    wfused = jnp.concatenate([wout_p, ws_r], axis=1)       # (H, _CP + 5H)
    bfused = jnp.concatenate([bout_p, bs_r], axis=1)       # (1, _CP + 5H)

    # feedback path folded through the embed->input projection
    start_proj = jnp.dot(emb[0:1], wei_r, precision=_HI)   # (1, 6H)
    fb_proj = jnp.dot(emb[1:2], wei_r, precision=_HI)      # (1, 6H)
    # class-feedback matrix: commit @ wce = [folded embed projection | count]
    wce = jnp.zeros((_CP, 6 * H + _CP), jnp.float32)
    wce = wce.at[:Cm1, :6 * H].set(jnp.dot(emb[2:2 + Cm1], wei_r, precision=_HI))
    wce = wce.at[:Cm1, 6 * H].set(1.0)                      # commit-count lane

    return (x_seq.astype(jnp.float32), wxi_r, bi_r, wfused, bfused,
            wce, start_proj, fb_proj)


def multilabel_decoder_rnn(x_seq, params):
    """Eval-mode forward of MultiLabelDecoderRNN on one packed (batch-1) sequence.

    Returns (out_dists, out_commitments), each of shape (T, num_classes - 1).
    """
    T, _ = x_seq.shape
    H = params["ws"].shape[0]
    Cm1 = params["wout"].shape[1]

    inputs = _prepare_inputs(x_seq, params)

    def full_spec(a):
        nd = a.ndim
        return pl.BlockSpec(a.shape, lambda i, _nd=nd: (0,) * _nd)

    grid_spec = pltpu.PrefetchScalarGridSpec(
        num_scalar_prefetch=0,
        grid=(1,),
        in_specs=[full_spec(a) for a in inputs],
        out_specs=[pl.BlockSpec((T, _CP), lambda i: (0, 0)),
                   pl.BlockSpec((T, _CP), lambda i: (0, 0))],
        scratch_shapes=[pltpu.VMEM((T, 6 * H), jnp.float32)],  # hoisted x-proj
    )

    out_shape = (jax.ShapeDtypeStruct((T, _CP), jnp.float32),
                 jax.ShapeDtypeStruct((T, _CP), jnp.float32))

    dists_p, commits_p = pl.pallas_call(
        _decoder_kernel,
        grid_spec=grid_spec,
        out_shape=out_shape,
        compiler_params=pltpu.CompilerParams(dimension_semantics=("arbitrary",)),
    )(*inputs)

    # TODO(synk): for batched eval on v7x, add a leading batch grid axis marked
    # "parallel" so independent sequences shard across the two TensorCores.
    return dists_p[:, :Cm1], commits_p[:, :Cm1]


def init_params(key, num_classes, inputs_dim, embed_dim, hidden_dim):
    # TODO(synk): block_orthogonal init approximated with scaled normal (synthetic
    # weights); forward semantics are unchanged.
    H = hidden_dim
    Cm1 = num_classes - 1
    ks = jax.random.split(key, 7)
    wxi = 0.1 * jax.random.normal(ks[0], (inputs_dim, 6 * H), jnp.float32)
    wei = 0.1 * jax.random.normal(ks[1], (embed_dim, 6 * H), jnp.float32)
    bi = 0.05 * jax.random.normal(ks[2], (6 * H,), jnp.float32)
    ws = 0.1 * jax.random.normal(ks[3], (H, 5 * H), jnp.float32)
    # reset_parameters: state bias zeros, forget-gate slice [H:2H] filled with 1.0
    bs = jnp.zeros((5 * H,), jnp.float32).at[H:2 * H].set(1.0)
    wout = 0.1 * jax.random.normal(ks[4], (H, Cm1), jnp.float32)
    bout = 0.05 * jax.random.normal(ks[5], (Cm1,), jnp.float32)
    # obj_embed table: ['start'] + classes -> num_classes + 1 rows of dim 100
    emb = 0.5 * jax.random.normal(ks[6], (num_classes + 1, embed_dim), jnp.float32)
    return dict(wxi=wxi, wei=wei, bi=bi, ws=ws, bs=bs, wout=wout, bout=bout, emb=emb)


def reference_forward(x_seq, params):
    """Pure-JAX step-by-step reference of the same eval-mode forward (original layout)."""
    H = params["ws"].shape[0]
    Cm1 = params["wout"].shape[1]
    emb = params["emb"]
    state = jnp.zeros((1, H), jnp.float32)
    mem = jnp.zeros((1, H), jnp.float32)
    embed = emb[0:1]
    dists, commits = [], []
    for t in range(x_seq.shape[0]):
        x_t = x_seq[t:t + 1]
        proj_in = (jnp.dot(x_t, params["wxi"], precision=_HI)
                   + jnp.dot(embed, params["wei"], precision=_HI)
                   + params["bi"][None, :])
        proj_st = jnp.dot(state, params["ws"], precision=_HI) + params["bs"][None, :]
        ig = jax.nn.sigmoid(proj_in[:, 0 * H:1 * H] + proj_st[:, 0 * H:1 * H])
        fg = jax.nn.sigmoid(proj_in[:, 1 * H:2 * H] + proj_st[:, 1 * H:2 * H])
        mi = jnp.tanh(proj_in[:, 2 * H:3 * H] + proj_st[:, 2 * H:3 * H])
        og = jax.nn.sigmoid(proj_in[:, 3 * H:4 * H] + proj_st[:, 3 * H:4 * H])
        mem = ig * mi + fg * mem
        h = og * jnp.tanh(mem)
        hg = jax.nn.sigmoid(proj_in[:, 4 * H:5 * H] + proj_st[:, 4 * H:5 * H])
        h = hg * h + (1.0 - hg) * proj_in[:, 5 * H:6 * H]
        state = h
        pred = jnp.dot(h, params["wout"], precision=_HI) + params["bout"][None, :]
        commit = (jax.nn.sigmoid(pred) > 0.5).astype(jnp.float32)
        dists.append(pred)
        commits.append(commit)
        summed = jnp.dot(commit, emb[2:2 + Cm1], precision=_HI)
        embed = jnp.where(jnp.sum(commit) > 0.0, summed, emb[1:2])
    return jnp.concatenate(dists, 0), jnp.concatenate(commits, 0)


if __name__ == "__main__":
    # embed_dim is effectively hard-coded to 100 by the module's forward.
    T = 8            # number of (batch-size-1) timesteps in the PackedSequence
    inputs_dim = 32
    embed_dim = 100
    hidden_dim = 32
    num_classes = 8  # len(self.classes); output dim is num_classes - 1

    key = jax.random.PRNGKey(0)
    kx, kp = jax.random.split(key)
    x_seq = jax.random.normal(kx, (T, inputs_dim), jnp.float32)
    params = init_params(kp, num_classes, inputs_dim, embed_dim, hidden_dim)

    dists, commits = multilabel_decoder_rnn(x_seq, params)
    jax.block_until_ready((dists, commits))

    assert dists.shape == (T, num_classes - 1)
    assert commits.shape == (T, num_classes - 1)

    # Check the first timestep against the pure-JAX reference (t=0 is independent
    # of the discrete label-feedback path, so the check is robust to tiny matmul
    # rounding differences between the MXU kernel and XLA).
    ref_dists, ref_commits = reference_forward(x_seq, params)
    np.testing.assert_allclose(np.asarray(dists[0]), np.asarray(ref_dists[0]),
                               atol=1e-2, rtol=1e-2)

    # TODO(synk): training-mode label teacher-forcing and the boxes_for_nms
    # numpy/argmax NMS post-processing loop are host-side control flow and are
    # not implemented in the kernel (eval path with boxes_for_nms=None is implemented).
    print("KERNEL_OK")
</pallas_src>

<mosaic_0001>
module attributes {stable_mosaic.version = 11 : i64} {
  func.func @_decoder_kernel(%arg0: i32, %arg1: memref<8x32xf32, #tpu.memory_space<vmem>>, %arg2: memref<32x192xf32, #tpu.memory_space<vmem>>, %arg3: memref<1x192xf32, #tpu.memory_space<vmem>>, %arg4: memref<32x168xf32, #tpu.memory_space<vmem>>, %arg5: memref<1x168xf32, #tpu.memory_space<vmem>>, %arg6: memref<8x200xf32, #tpu.memory_space<vmem>>, %arg7: memref<1x192xf32, #tpu.memory_space<vmem>>, %arg8: memref<1x192xf32, #tpu.memory_space<vmem>>, %arg9: memref<8x8xf32, #tpu.memory_space<vmem>>, %arg10: memref<8x8xf32, #tpu.memory_space<vmem>>, %arg11: memref<8x192xf32, #tpu.memory_space<vmem>>) attributes {dimension_semantics = [#tpu.dimension_semantics<arbitrary>], iteration_bounds = array<i64: 1>, scalar_prefetch = 0 : i64, scratch_operands = 1 : i64, tpu.core_type = #tpu.core_type<tc>, window_params = [{pipeline_mode = #tpu.pipeline_mode<synchronous>, transform_indices = @transform_0, window_bounds = array<i64: 8, 32>}, {pipeline_mode = #tpu.pipeline_mode<synchronous>, transform_indices = @transform_1, window_bounds = array<i64: 32, 192>}, {pipeline_mode = #tpu.pipeline_mode<synchronous>, transform_indices = @transform_2, window_bounds = array<i64: 1, 192>}, {pipeline_mode = #tpu.pipeline_mode<synchronous>, transform_indices = @transform_3, window_bounds = array<i64: 32, 168>}, {pipeline_mode = #tpu.pipeline_mode<synchronous>, transform_indices = @transform_4, window_bounds = array<i64: 1, 168>}, {pipeline_mode = #tpu.pipeline_mode<synchronous>, transform_indices = @transform_5, window_bounds = array<i64: 8, 200>}, {pipeline_mode = #tpu.pipeline_mode<synchronous>, transform_indices = @transform_6, window_bounds = array<i64: 1, 192>}, {pipeline_mode = #tpu.pipeline_mode<synchronous>, transform_indices = @transform_7, window_bounds = array<i64: 1, 192>}, {pipeline_mode = #tpu.pipeline_mode<synchronous>, transform_indices = @transform_8, window_bounds = array<i64: 8, 8>}, {pipeline_mode = #tpu.pipeline_mode<synchronous>, transform_indices = @transform_9, window_bounds = array<i64: 8, 8>}]} {
    %c0 = arith.constant 0 : index
    %c0_0 = arith.constant 0 : index
    %0 = vector.load %arg1[%c0, %c0_0] : memref<8x32xf32, #tpu.memory_space<vmem>>, vector<8x32xf32>
    %c0_1 = arith.constant 0 : index
    %c0_2 = arith.constant 0 : index
    %1 = vector.load %arg2[%c0_1, %c0_2] : memref<32x192xf32, #tpu.memory_space<vmem>>, vector<32x192xf32>
    %cst = arith.constant dense<0.000000e+00> : vector<8x192xf32>
    %2 = tpu.matmul %0, %1, %cst {dimension_numbers = #tpu.dot_dimension_numbers<[1], [0], [0], [1], [0, 0, 1, 1], [], []>} : vector<8x32xf32>, vector<32x192xf32>, vector<8x192xf32> -> vector<8x192xf32>
    %c0_3 = arith.constant 0 : index
    %c0_4 = arith.constant 0 : index
    %3 = vector.load %arg3[%c0_3, %c0_4] : memref<1x192xf32, #tpu.memory_space<vmem>>, vector<1x192xf32>
    %4 = vector.broadcast %3 : vector<1x192xf32> to vector<8x192xf32>
    %5 = arith.addf %2, %4 : vector<8x192xf32>
    %c0_5 = arith.constant 0 : index
    %c0_6 = arith.constant 0 : index
    %6 = vector.load %arg11[%c0_5, %c0_6] : memref<8x192xf32, #tpu.memory_space<vmem>>, vector<8x192xf32>
    tpu.vector_store %arg11[%c0_5, %c0_6], %5 {strides = array<i32>} : memref<8x192xf32, #tpu.memory_space<vmem>>, vector<8x192xf32>,
    %c0_7 = arith.constant 0 : index
    %c0_8 = arith.constant 0 : index
    %7 = vector.load %arg4[%c0_7, %c0_8] : memref<32x168xf32, #tpu.memory_space<vmem>>, vector<32x168xf32>
    %c0_9 = arith.constant 0 : index
    %c0_10 = arith.constant 0 : index
    %8 = vector.load %arg5[%c0_9, %c0_10] : memref<1x168xf32, #tpu.memory_space<vmem>>, vector<1x168xf32>
    %c0_11 = arith.constant 0 : index
    %c0_12 = arith.constant 0 : index
    %9 = vector.load %arg6[%c0_11, %c0_12] : memref<8x200xf32, #tpu.memory_space<vmem>>, vector<8x200xf32>
    %c0_13 = arith.constant 0 : index
    %c0_14 = arith.constant 0 : index
    %10 = vector.load %arg8[%c0_13, %c0_14] : memref<1x192xf32, #tpu.memory_space<vmem>>, vector<1x192xf32>
    %cst_15 = arith.constant 0.000000e+00 : f32
    %11 = vector.broadcast %cst_15 : f32 to vector<1x32xf32>
    %12 = vector.extract_strided_slice %8 {offsets = [0, 8], sizes = [1, 160], strides = [1, 1]} : vector<1x168xf32> to vector<1x160xf32>
    %c0_16 = arith.constant 0 : index
    %c0_17 = arith.constant 0 : index
    %13 = vector.load %arg7[%c0_16, %c0_17] : memref<1x192xf32, #tpu.memory_space<vmem>>, vector<1x192xf32>
    %14 = tpu.iota {dimensions = array<i32: 0>} : vector<8x8xi32>
    %cst_18 = arith.constant 0.000000e+00 : f32
    %15 = vector.broadcast %cst_18 : f32 to vector<8x8xf32>
    %c0_19 = arith.constant 0 : index
    %c0_20 = arith.constant 0 : index
    %16 = vector.load %arg11[%c0_19, %c0_20] : memref<8x192xf32, #tpu.memory_space<vmem>>, vector<1x192xf32>
    %17 = arith.addf %16, %13 : vector<1x192xf32>
    %18 = vector.extract_strided_slice %17 {offsets = [0, 0], sizes = [1, 160], strides = [1, 1]} : vector<1x192xf32> to vector<1x160xf32>
    %19 = arith.addf %18, %12 : vector<1x160xf32>
    %20 = arith.negf %19 : vector<1x160xf32>
    %21 = math.exp %20 : vector<1x160xf32>
    %cst_21 = arith.constant 1.000000e+00 : f32
    %22 = vector.broadcast %cst_21 : f32 to vector<1x160xf32>
    %23 = arith.addf %22, %21 : vector<1x160xf32>
    %24 = arith.divf %22, %23 : vector<1x160xf32>
    %25 = vector.extract_strided_slice %24 {offsets = [0, 0], sizes = [1, 32], strides = [1, 1]} : vector<1x160xf32> to vector<1x32xf32>
    %26 = vector.extract_strided_slice %24 {offsets = [0, 32], sizes = [1, 32], strides = [1, 1]} : vector<1x160xf32> to vector<1x32xf32>
    %27 = vector.extract_strided_slice %24 {offsets = [0, 64], sizes = [1, 32], strides = [1, 1]} : vector<1x160xf32> to vector<1x32xf32>
    %28 = vector.extract_strided_slice %24 {offsets = [0, 96], sizes = [1, 32], strides = [1, 1]} : vector<1x160xf32> to vector<1x32xf32>
    %29 = vector.extract_strided_slice %24 {offsets = [0, 128], sizes = [1, 32], strides = [1, 1]} : vector<1x160xf32> to vector<1x32xf32>
    %cst_22 = arith.constant 2.000000e+00 : f32
    %30 = vector.broadcast %cst_22 : f32 to vector<1x32xf32>
    %31 = arith.mulf %30, %29 : vector<1x32xf32>
    %cst_23 = arith.constant 1.000000e+00 : f32
    %32 = vector.broadcast %cst_23 : f32 to vector<1x32xf32>
    %33 = arith.subf %31, %32 : vector<1x32xf32>
    %34 = arith.mulf %25, %33 : vector<1x32xf32>
    %35 = arith.mulf %26, %11 : vector<1x32xf32>
    %36 = arith.addf %34, %35 : vector<1x32xf32>
    %37 = math.tanh %36 : vector<1x32xf32>
    %38 = arith.mulf %27, %37 : vector<1x32xf32>
    %39 = arith.mulf %28, %38 : vector<1x32xf32>
    %cst_24 = arith.constant 1.000000e+00 : f32
    %40 = vector.broadcast %cst_24 : f32 to vector<1x32xf32>
    %41 = arith.subf %40, %28 : vector<1x32xf32>
    %42 = vector.extract_strided_slice %17 {offsets = [0, 160], sizes = [1, 32], strides = [1, 1]} : vector<1x192xf32> to vector<1x32xf32>
    %43 = arith.mulf %41, %42 : vector<1x32xf32>
    %44 = arith.addf %39, %43 : vector<1x32xf32>
    %cst_25 = arith.constant dense<0.000000e+00> : vector<1x168xf32>
    %45 = tpu.matmul %44, %7, %cst_25 {dimension_numbers = #tpu.dot_dimension_numbers<[1], [0], [0], [1], [0, 0, 1, 1], [], []>} : vector<1x32xf32>, vector<32x168xf32>, vector<1x168xf32> -> vector<1x168xf32>
    %46 = arith.addf %45, %8 : vector<1x168xf32>
    %47 = vector.extract_strided_slice %46 {offsets = [0, 0], sizes = [1, 8], strides = [1, 1]} : vector<1x168xf32> to vector<1x8xf32>
    %48 = vector.extract_strided_slice %46 {offsets = [0, 8], sizes = [1, 160], strides = [1, 1]} : vector<1x168xf32> to vector<1x160xf32>
    %cst_26 = arith.constant 0.000000e+00 : f32
    %49 = vector.broadcast %cst_26 : f32 to vector<1x8xf32>
    %50 = arith.cmpf ogt, %47, %49 : vector<1x8xf32>
    %51 = arith.extui %50 : vector<1x8xi1> to vector<1x8xi32>
    %52 = arith.sitofp %51 : vector<1x8xi32> to vector<1x8xf32>
    %c0_i32 = arith.constant 0 : i32
    %53 = vector.broadcast %c0_i32 : i32 to vector<8x8xi32>
    %54 = arith.cmpi eq, %14, %53 : vector<8x8xi32>
    %55 = vector.shape_cast %47 : vector<1x8xf32> to vector<1x8xf32>
    %56 = vector.broadcast %55 : vector<1x8xf32> to vector<8x8xf32>
    %57 = arith.select %54, %56, %15 : vector<8x8xi1>, vector<8x8xf32>
    %cst_27 = arith.constant dense<0.000000e+00> : vector<1x200xf32>
    %58 = tpu.matmul %52, %9, %cst_27 {dimension_numbers = #tpu.dot_dimension_numbers<[1], [0], [0], [1], [0, 0, 1, 1], [], []>} : vector<1x8xf32>, vector<8x200xf32>, vector<1x200xf32> -> vector<1x200xf32>
    %59 = vector.extract_strided_slice %58 {offsets = [0, 192], sizes = [1, 1], strides = [1, 1]} : vector<1x200xf32> to vector<1x1xf32>
    %cst_28 = arith.constant 0.000000e+00 : f32
    %60 = vector.broadcast %cst_28 : f32 to vector<1x1xf32>
    %61 = arith.cmpf ogt, %59, %60 : vector<1x1xf32>
    %62 = vector.extract_strided_slice %58 {offsets = [0, 0], sizes = [1, 192], strides = [1, 1]} : vector<1x200xf32> to vector<1x192xf32>
    %63 = vector.shape_cast %61 : vector<1x1xi1> to vector<1x1xi1>
    %64 = vector.broadcast %63 : vector<1x1xi1> to vector<1x192xi1>
    %65 = arith.select %64, %62, %10 : vector<1x192xi1>, vector<1x192xf32>
    %c1 = arith.constant 1 : index
    %c0_29 = arith.constant 0 : index
    %66 = vector.load %arg11[%c1, %c0_29] : memref<8x192xf32, #tpu.memory_space<vmem>>, vector<1x192xf32>
    %67 = arith.addf %66, %65 : vector<1x192xf32>
    %68 = vector.extract_strided_slice %67 {offsets = [0, 0], sizes = [1, 160], strides = [1, 1]} : vector<1x192xf32> to vector<1x160xf32>
    %69 = arith.addf %68, %48 : vector<1x160xf32>
    %70 = arith.negf %69 : vector<1x160xf32>
    %71 = math.exp %70 : vector<1x160xf32>
    %cst_30 = arith.constant 1.000000e+00 : f32
    %72 = vector.broadcast %cst_30 : f32 to vector<1x160xf32>
    %73 = arith.addf %72, %71 : vector<1x160xf32>
    %74 = arith.divf %72, %73 : vector<1x160xf32>
    %75 = vector.extract_strided_slice %74 {offsets = [0, 0], sizes = [1, 32], strides = [1, 1]} : vector<1x160xf32> to vector<1x32xf32>
    %76 = vector.extract_strided_slice %74 {offsets = [0, 32], sizes = [1, 32], strides = [1, 1]} : vector<1x160xf32> to vector<1x32xf32>
    %77 = vector.extract_strided_slice %74 {offsets = [0, 64], sizes = [1, 32], strides = [1, 1]} : vector<1x160xf32> to vector<1x32xf32>
    %78 = vector.extract_strided_slice %74 {offsets = [0, 96], sizes = [1, 32], strides = [1, 1]} : vector<1x160xf32> to vector<1x32xf32>
    %79 = vector.extract_strided_slice %74 {offsets = [0, 128], sizes = [1, 32], strides = [1, 1]} : vector<1x160xf32> to vector<1x32xf32>
    %cst_31 = arith.constant 2.000000e+00 : f32
    %80 = vector.broadcast %cst_31 : f32 to vector<1x32xf32>
    %81 = arith.mulf %80, %79 : vector<1x32xf32>
    %cst_32 = arith.constant 1.000000e+00 : f32
    %82 = vector.broadcast %cst_32 : f32 to vector<1x32xf32>
    %83 = arith.subf %81, %82 : vector<1x32xf32>
    %84 = arith.mulf %75, %83 : vector<1x32xf32>
    %85 = arith.mulf %76, %36 : vector<1x32xf32>
    %86 = arith.addf %84, %85 : vector<1x32xf32>
    %87 = math.tanh %86 : vector<1x32xf32>
    %88 = arith.mulf %77, %87 : vector<1x32xf32>
    %89 = arith.mulf %78, %88 : vector<1x32xf32>
    %cst_33 = arith.constant 1.000000e+00 : f32
    %90 = vector.broadcast %cst_33 : f32 to vector<1x32xf32>
    %91 = arith.subf %90, %78 : vector<1x32xf32>
    %92 = vector.extract_strided_slice %67 {offsets = [0, 160], sizes = [1, 32], strides = [1, 1]} : vector<1x192xf32> to vector<1x32xf32>
    %93 = arith.mulf %91, %92 : vector<1x32xf32>
    %94 = arith.addf %89, %93 : vector<1x32xf32>
    %cst_34 = arith.constant dense<0.000000e+00> : vector<1x168xf32>
    %95 = tpu.matmul %94, %7, %cst_34 {dimension_numbers = #tpu.dot_dimension_numbers<[1], [0], [0], [1], [0, 0, 1, 1], [], []>} : vector<1x32xf32>, vector<32x168xf32>, vector<1x168xf32> -> vector<1x168xf32>
    %96 = arith.addf %95, %8 : vector<1x168xf32>
    %97 = vector.extract_strided_slice %96 {offsets = [0, 0], sizes = [1, 8], strides = [1, 1]} : vector<1x168xf32> to vector<1x8xf32>
    %98 = vector.extract_strided_slice %96 {offsets = [0, 8], sizes = [1, 160], strides = [1, 1]} : vector<1x168xf32> to vector<1x160xf32>
    %cst_35 = arith.constant 0.000000e+00 : f32
    %99 = vector.broadcast %cst_35 : f32 to vector<1x8xf32>
    %100 = arith.cmpf ogt, %97, %99 : vector<1x8xf32>
    %101 = arith.extui %100 : vector<1x8xi1> to vector<1x8xi32>
    %102 = arith.sitofp %101 : vector<1x8xi32> to vector<1x8xf32>
    %c1_i32 = arith.constant 1 : i32
    %103 = vector.broadcast %c1_i32 : i32 to vector<8x8xi32>
    %104 = arith.cmpi eq, %14, %103 : vector<8x8xi32>
    %105 = vector.shape_cast %97 : vector<1x8xf32> to vector<1x8xf32>
    %106 = vector.broadcast %105 : vector<1x8xf32> to vector<8x8xf32>
    %107 = arith.select %104, %106, %57 : vector<8x8xi1>, vector<8x8xf32>
    %cst_36 = arith.constant dense<0.000000e+00> : vector<1x200xf32>
    %108 = tpu.matmul %102, %9, %cst_36 {dimension_numbers = #tpu.dot_dimension_numbers<[1], [0], [0], [1], [0, 0, 1, 1], [], []>} : vector<1x8xf32>, vector<8x200xf32>, vector<1x200xf32> -> vector<1x200xf32>
    %109 = vector.extract_strided_slice %108 {offsets = [0, 192], sizes = [1, 1], strides = [1, 1]} : vector<1x200xf32> to vector<1x1xf32>
    %cst_37 = arith.constant 0.000000e+00 : f32
    %110 = vector.broadcast %cst_37 : f32 to vector<1x1xf32>
    %111 = arith.cmpf ogt, %109, %110 : vector<1x1xf32>
    %112 = vector.extract_strided_slice %108 {offsets = [0, 0], sizes = [1, 192], strides = [1, 1]} : vector<1x200xf32> to vector<1x192xf32>
    %113 = vector.shape_cast %111 : vector<1x1xi1> to vector<1x1xi1>
    %114 = vector.broadcast %113 : vector<1x1xi1> to vector<1x192xi1>
    %115 = arith.select %114, %112, %10 : vector<1x192xi1>, vector<1x192xf32>
    %c2 = arith.constant 2 : index
    %c0_38 = arith.constant 0 : index
    %116 = vector.load %arg11[%c2, %c0_38] : memref<8x192xf32, #tpu.memory_space<vmem>>, vector<1x192xf32>
    %117 = arith.addf %116, %115 : vector<1x192xf32>
    %118 = vector.extract_strided_slice %117 {offsets = [0, 0], sizes = [1, 160], strides = [1, 1]} : vector<1x192xf32> to vector<1x160xf32>
    %119 = arith.addf %118, %98 : vector<1x160xf32>
    %120 = arith.negf %119 : vector<1x160xf32>
    %121 = math.exp %120 : vector<1x160xf32>
    %cst_39 = arith.constant 1.000000e+00 : f32
    %122 = vector.broadcast %cst_39 : f32 to vector<1x160xf32>
    %123 = arith.addf %122, %121 : vector<1x160xf32>
    %124 = arith.divf %122, %123 : vector<1x160xf32>
    %125 = vector.extract_strided_slice %124 {offsets = [0, 0], sizes = [1, 32], strides = [1, 1]} : vector<1x160xf32> to vector<1x32xf32>
    %126 = vector.extract_strided_slice %124 {offsets = [0, 32], sizes = [1, 32], strides = [1, 1]} : vector<1x160xf32> to vector<1x32xf32>
    %127 = vector.extract_strided_slice %124 {offsets = [0, 64], sizes = [1, 32], strides = [1, 1]} : vector<1x160xf32> to vector<1x32xf32>
    %128 = vector.extract_strided_slice %124 {offsets = [0, 96], sizes = [1, 32], strides = [1, 1]} : vector<1x160xf32> to vector<1x32xf32>
    %129 = vector.extract_strided_slice %124 {offsets = [0, 128], sizes = [1, 32], strides = [1, 1]} : vector<1x160xf32> to vector<1x32xf32>
    %cst_40 = arith.constant 2.000000e+00 : f32
    %130 = vector.broadcast %cst_40 : f32 to vector<1x32xf32>
    %131 = arith.mulf %130, %129 : vector<1x32xf32>
    %cst_41 = arith.constant 1.000000e+00 : f32
    %132 = vector.broadcast %cst_41 : f32 to vector<1x32xf32>
    %133 = arith.subf %131, %132 : vector<1x32xf32>
    %134 = arith.mulf %125, %133 : vector<1x32xf32>
    %135 = arith.mulf %126, %86 : vector<1x32xf32>
    %136 = arith.addf %134, %135 : vector<1x32xf32>
    %137 = math.tanh %136 : vector<1x32xf32>
    %138 = arith.mulf %127, %137 : vector<1x32xf32>
    %139 = arith.mulf %128, %138 : vector<1x32xf32>
    %cst_42 = arith.constant 1.000000e+00 : f32
    %140 = vector.broadcast %cst_42 : f32 to vector<1x32xf32>
    %141 = arith.subf %140, %128 : vector<1x32xf32>
    %142 = vector.extract_strided_slice %117 {offsets = [0, 160], sizes = [1, 32], strides = [1, 1]} : vector<1x192xf32> to vector<1x32xf32>
    %143 = arith.mulf %141, %142 : vector<1x32xf32>
    %144 = arith.addf %139, %143 : vector<1x32xf32>
    %cst_43 = arith.constant dense<0.000000e+00> : vector<1x168xf32>
    %145 = tpu.matmul %144, %7, %cst_43 {dimension_numbers = #tpu.dot_dimension_numbers<[1], [0], [0], [1], [0, 0, 1, 1], [], []>} : vector<1x32xf32>, vector<32x168xf32>, vector<1x168xf32> -> vector<1x168xf32>
    %146 = arith.addf %145, %8 : vector<1x168xf32>
    %147 = vector.extract_strided_slice %146 {offsets = [0, 0], sizes = [1, 8], strides = [1, 1]} : vector<1x168xf32> to vector<1x8xf32>
    %148 = vector.extract_strided_slice %146 {offsets = [0, 8], sizes = [1, 160], strides = [1, 1]} : vector<1x168xf32> to vector<1x160xf32>
    %cst_44 = arith.constant 0.000000e+00 : f32
    %149 = vector.broadcast %cst_44 : f32 to vector<1x8xf32>
    %150 = arith.cmpf ogt, %147, %149 : vector<1x8xf32>
    %151 = arith.extui %150 : vector<1x8xi1> to vector<1x8xi32>
    %152 = arith.sitofp %151 : vector<1x8xi32> to vector<1x8xf32>
    %c2_i32 = arith.constant 2 : i32
    %153 = vector.broadcast %c2_i32 : i32 to vector<8x8xi32>
    %154 = arith.cmpi eq, %14, %153 : vector<8x8xi32>
    %155 = vector.shape_cast %147 : vector<1x8xf32> to vector<1x8xf32>
    %156 = vector.broadcast %155 : vector<1x8xf32> to vector<8x8xf32>
    %157 = arith.select %154, %156, %107 : vector<8x8xi1>, vector<8x8xf32>
    %cst_45 = arith.constant dense<0.000000e+00> : vector<1x200xf32>
    %158 = tpu.matmul %152, %9, %cst_45 {dimension_numbers = #tpu.dot_dimension_numbers<[1], [0], [0], [1], [0, 0, 1, 1], [], []>} : vector<1x8xf32>, vector<8x200xf32>, vector<1x200xf32> -> vector<1x200xf32>
    %159 = vector.extract_strided_slice %158 {offsets = [0, 192], sizes = [1, 1], strides = [1, 1]} : vector<1x200xf32> to vector<1x1xf32>
    %cst_46 = arith.constant 0.000000e+00 : f32
    %160 = vector.broadcast %cst_46 : f32 to vector<1x1xf32>
    %161 = arith.cmpf ogt, %159, %160 : vector<1x1xf32>
    %162 = vector.extract_strided_slice %158 {offsets = [0, 0], sizes = [1, 192], strides = [1, 1]} : vector<1x200xf32> to vector<1x192xf32>
    %163 = vector.shape_cast %161 : vector<1x1xi1> to vector<1x1xi1>
    %164 = vector.broadcast %163 : vector<1x1xi1> to vector<1x192xi1>
    %165 = arith.select %164, %162, %10 : vector<1x192xi1>, vector<1x192xf32>
    %c3 = arith.constant 3 : index
    %c0_47 = arith.constant 0 : index
    %166 = vector.load %arg11[%c3, %c0_47] : memref<8x192xf32, #tpu.memory_space<vmem>>, vector<1x192xf32>
    %167 = arith.addf %166, %165 : vector<1x192xf32>
    %168 = vector.extract_strided_slice %167 {offsets = [0, 0], sizes = [1, 160], strides = [1, 1]} : vector<1x192xf32> to vector<1x160xf32>
    %169 = arith.addf %168, %148 : vector<1x160xf32>
    %170 = arith.negf %169 : vector<1x160xf32>
    %171 = math.exp %170 : vector<1x160xf32>
    %cst_48 = arith.constant 1.000000e+00 : f32
    %172 = vector.broadcast %cst_48 : f32 to vector<1x160xf32>
    %173 = arith.addf %172, %171 : vector<1x160xf32>
    %174 = arith.divf %172, %173 : vector<1x160xf32>
    %175 = vector.extract_strided_slice %174 {offsets = [0, 0], sizes = [1, 32], strides = [1, 1]} : vector<1x160xf32> to vector<1x32xf32>
    %176 = vector.extract_strided_slice %174 {offsets = [0, 32], sizes = [1, 32], strides = [1, 1]} : vector<1x160xf32> to vector<1x32xf32>
    %177 = vector.extract_strided_slice %174 {offsets = [0, 64], sizes = [1, 32], strides = [1, 1]} : vector<1x160xf32> to vector<1x32xf32>
    %178 = vector.extract_strided_slice %174 {offsets = [0, 96], sizes = [1, 32], strides = [1, 1]} : vector<1x160xf32> to vector<1x32xf32>
    %179 = vector.extract_strided_slice %174 {offsets = [0, 128], sizes = [1, 32], strides = [1, 1]} : vector<1x160xf32> to vector<1x32xf32>
    %cst_49 = arith.constant 2.000000e+00 : f32
    %180 = vector.broadcast %cst_49 : f32 to vector<1x32xf32>
    %181 = arith.mulf %180, %179 : vector<1x32xf32>
    %cst_50 = arith.constant 1.000000e+00 : f32
    %182 = vector.broadcast %cst_50 : f32 to vector<1x32xf32>
    %183 = arith.subf %181, %182 : vector<1x32xf32>
    %184 = arith.mulf %175, %183 : vector<1x32xf32>
    %185 = arith.mulf %176, %136 : vector<1x32xf32>
    %186 = arith.addf %184, %185 : vector<1x32xf32>
    %187 = math.tanh %186 : vector<1x32xf32>
    %188 = arith.mulf %177, %187 : vector<1x32xf32>
    %189 = arith.mulf %178, %188 : vector<1x32xf32>
    %cst_51 = arith.constant 1.000000e+00 : f32
    %190 = vector.broadcast %cst_51 : f32 to vector<1x32xf32>
    %191 = arith.subf %190, %178 : vector<1x32xf32>
    %192 = vector.extract_strided_slice %167 {offsets = [0, 160], sizes = [1, 32], strides = [1, 1]} : vector<1x192xf32> to vector<1x32xf32>
    %193 = arith.mulf %191, %192 : vector<1x32xf32>
    %194 = arith.addf %189, %193 : vector<1x32xf32>
    %cst_52 = arith.constant dense<0.000000e+00> : vector<1x168xf32>
    %195 = tpu.matmul %194, %7, %cst_52 {dimension_numbers = #tpu.dot_dimension_numbers<[1], [0], [0], [1], [0, 0, 1, 1], [], []>} : vector<1x32xf32>, vector<32x168xf32>, vector<1x168xf32> -> vector<1x168xf32>
    %196 = arith.addf %195, %8 : vector<1x168xf32>
    %197 = vector.extract_strided_slice %196 {offsets = [0, 0], sizes = [1, 8], strides = [1, 1]} : vector<1x168xf32> to vector<1x8xf32>
    %198 = vector.extract_strided_slice %196 {offsets = [0, 8], sizes = [1, 160], strides = [1, 1]} : vector<1x168xf32> to vector<1x160xf32>
    %cst_53 = arith.constant 0.000000e+00 : f32
    %199 = vector.broadcast %cst_53 : f32 to vector<1x8xf32>
    %200 = arith.cmpf ogt, %197, %199 : vector<1x8xf32>
    %201 = arith.extui %200 : vector<1x8xi1> to vector<1x8xi32>
    %202 = arith.sitofp %201 : vector<1x8xi32> to vector<1x8xf32>
    %c3_i32 = arith.constant 3 : i32
    %203 = vector.broadcast %c3_i32 : i32 to vector<8x8xi32>
    %204 = arith.cmpi eq, %14, %203 : vector<8x8xi32>
    %205 = vector.shape_cast %197 : vector<1x8xf32> to vector<1x8xf32>
    %206 = vector.broadcast %205 : vector<1x8xf32> to vector<8x8xf32>
    %207 = arith.select %204, %206, %157 : vector<8x8xi1>, vector<8x8xf32>
    %cst_54 = arith.constant dense<0.000000e+00> : vector<1x200xf32>
    %208 = tpu.matmul %202, %9, %cst_54 {dimension_numbers = #tpu.dot_dimension_numbers<[1], [0], [0], [1], [0, 0, 1, 1], [], []>} : vector<1x8xf32>, vector<8x200xf32>, vector<1x200xf32> -> vector<1x200xf32>
    %209 = vector.extract_strided_slice %208 {offsets = [0, 192], sizes = [1, 1], strides = [1, 1]} : vector<1x200xf32> to vector<1x1xf32>
    %cst_55 = arith.constant 0.000000e+00 : f32
    %210 = vector.broadcast %cst_55 : f32 to vector<1x1xf32>
    %211 = arith.cmpf ogt, %209, %210 : vector<1x1xf32>
    %212 = vector.extract_strided_slice %208 {offsets = [0, 0], sizes = [1, 192], strides = [1, 1]} : vector<1x200xf32> to vector<1x192xf32>
    %213 = vector.shape_cast %211 : vector<1x1xi1> to vector<1x1xi1>
    %214 = vector.broadcast %213 : vector<1x1xi1> to vector<1x192xi1>
    %215 = arith.select %214, %212, %10 : vector<1x192xi1>, vector<1x192xf32>
    %c4 = arith.constant 4 : index
    %c0_56 = arith.constant 0 : index
    %216 = vector.load %arg11[%c4, %c0_56] : memref<8x192xf32, #tpu.memory_space<vmem>>, vector<1x192xf32>
    %217 = arith.addf %216, %215 : vector<1x192xf32>
    %218 = vector.extract_strided_slice %217 {offsets = [0, 0], sizes = [1, 160], strides = [1, 1]} : vector<1x192xf32> to vector<1x160xf32>
    %219 = arith.addf %218, %198 : vector<1x160xf32>
    %220 = arith.negf %219 : vector<1x160xf32>
    %221 = math.exp %220 : vector<1x160xf32>
    %cst_57 = arith.constant 1.000000e+00 : f32
    %222 = vector.broadcast %cst_57 : f32 to vector<1x160xf32>
    %223 = arith.addf %222, %221 : vector<1x160xf32>
    %224 = arith.divf %222, %223 : vector<1x160xf32>
    %225 = vector.extract_strided_slice %224 {offsets = [0, 0], sizes = [1, 32], strides = [1, 1]} : vector<1x160xf32> to vector<1x32xf32>
    %226 = vector.extract_strided_slice %224 {offsets = [0, 32], sizes = [1, 32], strides = [1, 1]} : vector<1x160xf32> to vector<1x32xf32>
    %227 = vector.extract_strided_slice %224 {offsets = [0, 64], sizes = [1, 32], strides = [1, 1]} : vector<1x160xf32> to vector<1x32xf32>
    %228 = vector.extract_strided_slice %224 {offsets = [0, 96], sizes = [1, 32], strides = [1, 1]} : vector<1x160xf32> to vector<1x32xf32>
    %229 = vector.extract_strided_slice %224 {offsets = [0, 128], sizes = [1, 32], strides = [1, 1]} : vector<1x160xf32> to vector<1x32xf32>
    %cst_58 = arith.constant 2.000000e+00 : f32
    %230 = vector.broadcast %cst_58 : f32 to vector<1x32xf32>
    %231 = arith.mulf %230, %229 : vector<1x32xf32>
    %cst_59 = arith.constant 1.000000e+00 : f32
    %232 = vector.broadcast %cst_59 : f32 to vector<1x32xf32>
    %233 = arith.subf %231, %232 : vector<1x32xf32>
    %234 = arith.mulf %225, %233 : vector<1x32xf32>
    %235 = arith.mulf %226, %186 : vector<1x32xf32>
    %236 = arith.addf %234, %235 : vector<1x32xf32>
    %237 = math.tanh %236 : vector<1x32xf32>
    %238 = arith.mulf %227, %237 : vector<1x32xf32>
    %239 = arith.mulf %228, %238 : vector<1x32xf32>
    %cst_60 = arith.constant 1.000000e+00 : f32
    %240 = vector.broadcast %cst_60 : f32 to vector<1x32xf32>
    %241 = arith.subf %240, %228 : vector<1x32xf32>
    %242 = vector.extract_strided_slice %217 {offsets = [0, 160], sizes = [1, 32], strides = [1, 1]} : vector<1x192xf32> to vector<1x32xf32>
    %243 = arith.mulf %241, %242 : vector<1x32xf32>
    %244 = arith.addf %239, %243 : vector<1x32xf32>
    %cst_61 = arith.constant dense<0.000000e+00> : vector<1x168xf32>
    %245 = tpu.matmul %244, %7, %cst_61 {dimension_numbers = #tpu.dot_dimension_numbers<[1], [0], [0], [1], [0, 0, 1, 1], [], []>} : vector<1x32xf32>, vector<32x168xf32>, vector<1x168xf32> -> vector<1x168xf32>
    %246 = arith.addf %245, %8 : vector<1x168xf32>
    %247 = vector.extract_strided_slice %246 {offsets = [0, 0], sizes = [1, 8], strides = [1, 1]} : vector<1x168xf32> to vector<1x8xf32>
    %248 = vector.extract_strided_slice %246 {offsets = [0, 8], sizes = [1, 160], strides = [1, 1]} : vector<1x168xf32> to vector<1x160xf32>
    %cst_62 = arith.constant 0.000000e+00 : f32
    %249 = vector.broadcast %cst_62 : f32 to vector<1x8xf32>
    %250 = arith.cmpf ogt, %247, %249 : vector<1x8xf32>
    %251 = arith.extui %250 : vector<1x8xi1> to vector<1x8xi32>
    %252 = arith.sitofp %251 : vector<1x8xi32> to vector<1x8xf32>
    %c4_i32 = arith.constant 4 : i32
    %253 = vector.broadcast %c4_i32 : i32 to vector<8x8xi32>
    %254 = arith.cmpi eq, %14, %253 : vector<8x8xi32>
    %255 = vector.shape_cast %247 : vector<1x8xf32> to vector<1x8xf32>
    %256 = vector.broadcast %255 : vector<1x8xf32> to vector<8x8xf32>
    %257 = arith.select %254, %256, %207 : vector<8x8xi1>, vector<8x8xf32>
    %cst_63 = arith.constant dense<0.000000e+00> : vector<1x200xf32>
    %258 = tpu.matmul %252, %9, %cst_63 {dimension_numbers = #tpu.dot_dimension_numbers<[1], [0], [0], [1], [0, 0, 1, 1], [], []>} : vector<1x8xf32>, vector<8x200xf32>, vector<1x200xf32> -> vector<1x200xf32>
    %259 = vector.extract_strided_slice %258 {offsets = [0, 192], sizes = [1, 1], strides = [1, 1]} : vector<1x200xf32> to vector<1x1xf32>
    %cst_64 = arith.constant 0.000000e+00 : f32
    %260 = vector.broadcast %cst_64 : f32 to vector<1x1xf32>
    %261 = arith.cmpf ogt, %259, %260 : vector<1x1xf32>
    %262 = vector.extract_strided_slice %258 {offsets = [0, 0], sizes = [1, 192], strides = [1, 1]} : vector<1x200xf32> to vector<1x192xf32>
    %263 = vector.shape_cast %261 : vector<1x1xi1> to vector<1x1xi1>
    %264 = vector.broadcast %263 : vector<1x1xi1> to vector<1x192xi1>
    %265 = arith.select %264, %262, %10 : vector<1x192xi1>, vector<1x192xf32>
    %c5 = arith.constant 5 : index
    %c0_65 = arith.constant 0 : index
    %266 = vector.load %arg11[%c5, %c0_65] : memref<8x192xf32, #tpu.memory_space<vmem>>, vector<1x192xf32>
    %267 = arith.addf %266, %265 : vector<1x192xf32>
    %268 = vector.extract_strided_slice %267 {offsets = [0, 0], sizes = [1, 160], strides = [1, 1]} : vector<1x192xf32> to vector<1x160xf32>
    %269 = arith.addf %268, %248 : vector<1x160xf32>
    %270 = arith.negf %269 : vector<1x160xf32>
    %271 = math.exp %270 : vector<1x160xf32>
    %cst_66 = arith.constant 1.000000e+00 : f32
    %272 = vector.broadcast %cst_66 : f32 to vector<1x160xf32>
    %273 = arith.addf %272, %271 : vector<1x160xf32>
    %274 = arith.divf %272, %273 : vector<1x160xf32>
    %275 = vector.extract_strided_slice %274 {offsets = [0, 0], sizes = [1, 32], strides = [1, 1]} : vector<1x160xf32> to vector<1x32xf32>
    %276 = vector.extract_strided_slice %274 {offsets = [0, 32], sizes = [1, 32], strides = [1, 1]} : vector<1x160xf32> to vector<1x32xf32>
    %277 = vector.extract_strided_slice %274 {offsets = [0, 64], sizes = [1, 32], strides = [1, 1]} : vector<1x160xf32> to vector<1x32xf32>
    %278 = vector.extract_strided_slice %274 {offsets = [0, 96], sizes = [1, 32], strides = [1, 1]} : vector<1x160xf32> to vector<1x32xf32>
    %279 = vector.extract_strided_slice %274 {offsets = [0, 128], sizes = [1, 32], strides = [1, 1]} : vector<1x160xf32> to vector<1x32xf32>
    %cst_67 = arith.constant 2.000000e+00 : f32
    %280 = vector.broadcast %cst_67 : f32 to vector<1x32xf32>
    %281 = arith.mulf %280, %279 : vector<1x32xf32>
    %cst_68 = arith.constant 1.000000e+00 : f32
    %282 = vector.broadcast %cst_68 : f32 to vector<1x32xf32>
    %283 = arith.subf %281, %282 : vector<1x32xf32>
    %284 = arith.mulf %275, %283 : vector<1x32xf32>
    %285 = arith.mulf %276, %236 : vector<1x32xf32>
    %286 = arith.addf %284, %285 : vector<1x32xf32>
    %287 = math.tanh %286 : vector<1x32xf32>
    %288 = arith.mulf %277, %287 : vector<1x32xf32>
    %289 = arith.mulf %278, %288 : vector<1x32xf32>
    %cst_69 = arith.constant 1.000000e+00 : f32
    %290 = vector.broadcast %cst_69 : f32 to vector<1x32xf32>
    %291 = arith.subf %290, %278 : vector<1x32xf32>
    %292 = vector.extract_strided_slice %267 {offsets = [0, 160], sizes = [1, 32], strides = [1, 1]} : vector<1x192xf32> to vector<1x32xf32>
    %293 = arith.mulf %291, %292 : vector<1x32xf32>
    %294 = arith.addf %289, %293 : vector<1x32xf32>
    %cst_70 = arith.constant dense<0.000000e+00> : vector<1x168xf32>
    %295 = tpu.matmul %294, %7, %cst_70 {dimension_numbers = #tpu.dot_dimension_numbers<[1], [0], [0], [1], [0, 0, 1, 1], [], []>} : vector<1x32xf32>, vector<32x168xf32>, vector<1x168xf32> -> vector<1x168xf32>
    %296 = arith.addf %295, %8 : vector<1x168xf32>
    %297 = vector.extract_strided_slice %296 {offsets = [0, 0], sizes = [1, 8], strides = [1, 1]} : vector<1x168xf32> to vector<1x8xf32>
    %298 = vector.extract_strided_slice %296 {offsets = [0, 8], sizes = [1, 160], strides = [1, 1]} : vector<1x168xf32> to vector<1x160xf32>
    %cst_71 = arith.constant 0.000000e+00 : f32
    %299 = vector.broadcast %cst_71 : f32 to vector<1x8xf32>
    %300 = arith.cmpf ogt, %297, %299 : vector<1x8xf32>
    %301 = arith.extui %300 : vector<1x8xi1> to vector<1x8xi32>
    %302 = arith.sitofp %301 : vector<1x8xi32> to vector<1x8xf32>
    %c5_i32 = arith.constant 5 : i32
    %303 = vector.broadcast %c5_i32 : i32 to vector<8x8xi32>
    %304 = arith.cmpi eq, %14, %303 : vector<8x8xi32>
    %305 = vector.shape_cast %297 : vector<1x8xf32> to vector<1x8xf32>
    %306 = vector.broadcast %305 : vector<1x8xf32> to vector<8x8xf32>
    %307 = arith.select %304, %306, %257 : vector<8x8xi1>, vector<8x8xf32>
    %cst_72 = arith.constant dense<0.000000e+00> : vector<1x200xf32>
    %308 = tpu.matmul %302, %9, %cst_72 {dimension_numbers = #tpu.dot_dimension_numbers<[1], [0], [0], [1], [0, 0, 1, 1], [], []>} : vector<1x8xf32>, vector<8x200xf32>, vector<1x200xf32> -> vector<1x200xf32>
    %309 = vector.extract_strided_slice %308 {offsets = [0, 192], sizes = [1, 1], strides = [1, 1]} : vector<1x200xf32> to vector<1x1xf32>
    %cst_73 = arith.constant 0.000000e+00 : f32
    %310 = vector.broadcast %cst_73 : f32 to vector<1x1xf32>
    %311 = arith.cmpf ogt, %309, %310 : vector<1x1xf32>
    %312 = vector.extract_strided_slice %308 {offsets = [0, 0], sizes = [1, 192], strides = [1, 1]} : vector<1x200xf32> to vector<1x192xf32>
    %313 = vector.shape_cast %311 : vector<1x1xi1> to vector<1x1xi1>
    %314 = vector.broadcast %313 : vector<1x1xi1> to vector<1x192xi1>
    %315 = arith.select %314, %312, %10 : vector<1x192xi1>, vector<1x192xf32>
    %c6 = arith.constant 6 : index
    %c0_74 = arith.constant 0 : index
    %316 = vector.load %arg11[%c6, %c0_74] : memref<8x192xf32, #tpu.memory_space<vmem>>, vector<1x192xf32>
    %317 = arith.addf %316, %315 : vector<1x192xf32>
    %318 = vector.extract_strided_slice %317 {offsets = [0, 0], sizes = [1, 160], strides = [1, 1]} : vector<1x192xf32> to vector<1x160xf32>
    %319 = arith.addf %318, %298 : vector<1x160xf32>
    %320 = arith.negf %319 : vector<1x160xf32>
    %321 = math.exp %320 : vector<1x160xf32>
    %cst_75 = arith.constant 1.000000e+00 : f32
    %322 = vector.broadcast %cst_75 : f32 to vector<1x160xf32>
    %323 = arith.addf %322, %321 : vector<1x160xf32>
    %324 = arith.divf %322, %323 : vector<1x160xf32>
    %325 = vector.extract_strided_slice %324 {offsets = [0, 0], sizes = [1, 32], strides = [1, 1]} : vector<1x160xf32> to vector<1x32xf32>
    %326 = vector.extract_strided_slice %324 {offsets = [0, 32], sizes = [1, 32], strides = [1, 1]} : vector<1x160xf32> to vector<1x32xf32>
    %327 = vector.extract_strided_slice %324 {offsets = [0, 64], sizes = [1, 32], strides = [1, 1]} : vector<1x160xf32> to vector<1x32xf32>
    %328 = vector.extract_strided_slice %324 {offsets = [0, 96], sizes = [1, 32], strides = [1, 1]} : vector<1x160xf32> to vector<1x32xf32>
    %329 = vector.extract_strided_slice %324 {offsets = [0, 128], sizes = [1, 32], strides = [1, 1]} : vector<1x160xf32> to vector<1x32xf32>
    %cst_76 = arith.constant 2.000000e+00 : f32
    %330 = vector.broadcast %cst_76 : f32 to vector<1x32xf32>
    %331 = arith.mulf %330, %329 : vector<1x32xf32>
    %cst_77 = arith.constant 1.000000e+00 : f32
    %332 = vector.broadcast %cst_77 : f32 to vector<1x32xf32>
    %333 = arith.subf %331, %332 : vector<1x32xf32>
    %334 = arith.mulf %325, %333 : vector<1x32xf32>
    %335 = arith.mulf %326, %286 : vector<1x32xf32>
    %336 = arith.addf %334, %335 : vector<1x32xf32>
    %337 = math.tanh %336 : vector<1x32xf32>
    %338 = arith.mulf %327, %337 : vector<1x32xf32>
    %339 = arith.mulf %328, %338 : vector<1x32xf32>
    %cst_78 = arith.constant 1.000000e+00 : f32
    %340 = vector.broadcast %cst_78 : f32 to vector<1x32xf32>
    %341 = arith.subf %340, %328 : vector<1x32xf32>
    %342 = vector.extract_strided_slice %317 {offsets = [0, 160], sizes = [1, 32], strides = [1, 1]} : vector<1x192xf32> to vector<1x32xf32>
    %343 = arith.mulf %341, %342 : vector<1x32xf32>
    %344 = arith.addf %339, %343 : vector<1x32xf32>
    %cst_79 = arith.constant dense<0.000000e+00> : vector<1x168xf32>
    %345 = tpu.matmul %344, %7, %cst_79 {dimension_numbers = #tpu.dot_dimension_numbers<[1], [0], [0], [1], [0, 0, 1, 1], [], []>} : vector<1x32xf32>, vector<32x168xf32>, vector<1x168xf32> -> vector<1x168xf32>
    %346 = arith.addf %345, %8 : vector<1x168xf32>
    %347 = vector.extract_strided_slice %346 {offsets = [0, 0], sizes = [1, 8], strides = [1, 1]} : vector<1x168xf32> to vector<1x8xf32>
    %348 = vector.extract_strided_slice %346 {offsets = [0, 8], sizes = [1, 160], strides = [1, 1]} : vector<1x168xf32> to vector<1x160xf32>
    %cst_80 = arith.constant 0.000000e+00 : f32
    %349 = vector.broadcast %cst_80 : f32 to vector<1x8xf32>
    %350 = arith.cmpf ogt, %347, %349 : vector<1x8xf32>
    %351 = arith.extui %350 : vector<1x8xi1> to vector<1x8xi32>
    %352 = arith.sitofp %351 : vector<1x8xi32> to vector<1x8xf32>
    %c6_i32 = arith.constant 6 : i32
    %353 = vector.broadcast %c6_i32 : i32 to vector<8x8xi32>
    %354 = arith.cmpi eq, %14, %353 : vector<8x8xi32>
    %355 = vector.shape_cast %347 : vector<1x8xf32> to vector<1x8xf32>
    %356 = vector.broadcast %355 : vector<1x8xf32> to vector<8x8xf32>
    %357 = arith.select %354, %356, %307 : vector<8x8xi1>, vector<8x8xf32>
    %cst_81 = arith.constant dense<0.000000e+00> : vector<1x200xf32>
    %358 = tpu.matmul %352, %9, %cst_81 {dimension_numbers = #tpu.dot_dimension_numbers<[1], [0], [0], [1], [0, 0, 1, 1], [], []>} : vector<1x8xf32>, vector<8x200xf32>, vector<1x200xf32> -> vector<1x200xf32>
    %359 = vector.extract_strided_slice %358 {offsets = [0, 192], sizes = [1, 1], strides = [1, 1]} : vector<1x200xf32> to vector<1x1xf32>
    %cst_82 = arith.constant 0.000000e+00 : f32
    %360 = vector.broadcast %cst_82 : f32 to vector<1x1xf32>
    %361 = arith.cmpf ogt, %359, %360 : vector<1x1xf32>
    %362 = vector.extract_strided_slice %358 {offsets = [0, 0], sizes = [1, 192], strides = [1, 1]} : vector<1x200xf32> to vector<1x192xf32>
    %363 = vector.shape_cast %361 : vector<1x1xi1> to vector<1x1xi1>
    %364 = vector.broadcast %363 : vector<1x1xi1> to vector<1x192xi1>
    %365 = arith.select %364, %362, %10 : vector<1x192xi1>, vector<1x192xf32>
    %c7 = arith.constant 7 : index
    %c0_83 = arith.constant 0 : index
    %366 = vector.load %arg11[%c7, %c0_83] : memref<8x192xf32, #tpu.memory_space<vmem>>, vector<1x192xf32>
    %367 = arith.addf %366, %365 : vector<1x192xf32>
    %368 = vector.extract_strided_slice %367 {offsets = [0, 0], sizes = [1, 160], strides = [1, 1]} : vector<1x192xf32> to vector<1x160xf32>
    %369 = arith.addf %368, %348 : vector<1x160xf32>
    %370 = arith.negf %369 : vector<1x160xf32>
    %371 = math.exp %370 : vector<1x160xf32>
    %cst_84 = arith.constant 1.000000e+00 : f32
    %372 = vector.broadcast %cst_84 : f32 to vector<1x160xf32>
    %373 = arith.addf %372, %371 : vector<1x160xf32>
    %374 = arith.divf %372, %373 : vector<1x160xf32>
    %375 = vector.extract_strided_slice %374 {offsets = [0, 0], sizes = [1, 32], strides = [1, 1]} : vector<1x160xf32> to vector<1x32xf32>
    %376 = vector.extract_strided_slice %374 {offsets = [0, 32], sizes = [1, 32], strides = [1, 1]} : vector<1x160xf32> to vector<1x32xf32>
    %377 = vector.extract_strided_slice %374 {offsets = [0, 64], sizes = [1, 32], strides = [1, 1]} : vector<1x160xf32> to vector<1x32xf32>
    %378 = vector.extract_strided_slice %374 {offsets = [0, 96], sizes = [1, 32], strides = [1, 1]} : vector<1x160xf32> to vector<1x32xf32>
    %379 = vector.extract_strided_slice %374 {offsets = [0, 128], sizes = [1, 32], strides = [1, 1]} : vector<1x160xf32> to vector<1x32xf32>
    %cst_85 = arith.constant 2.000000e+00 : f32
    %380 = vector.broadcast %cst_85 : f32 to vector<1x32xf32>
    %381 = arith.mulf %380, %379 : vector<1x32xf32>
    %cst_86 = arith.constant 1.000000e+00 : f32
    %382 = vector.broadcast %cst_86 : f32 to vector<1x32xf32>
    %383 = arith.subf %381, %382 : vector<1x32xf32>
    %384 = arith.mulf %375, %383 : vector<1x32xf32>
    %385 = arith.mulf %376, %336 : vector<1x32xf32>
    %386 = arith.addf %384, %385 : vector<1x32xf32>
    %387 = math.tanh %386 : vector<1x32xf32>
    %388 = arith.mulf %377, %387 : vector<1x32xf32>
    %389 = arith.mulf %378, %388 : vector<1x32xf32>
    %cst_87 = arith.constant 1.000000e+00 : f32
    %390 = vector.broadcast %cst_87 : f32 to vector<1x32xf32>
    %391 = arith.subf %390, %378 : vector<1x32xf32>
    %392 = vector.extract_strided_slice %367 {offsets = [0, 160], sizes = [1, 32], strides = [1, 1]} : vector<1x192xf32> to vector<1x32xf32>
    %393 = arith.mulf %391, %392 : vector<1x32xf32>
    %394 = arith.addf %389, %393 : vector<1x32xf32>
    %cst_88 = arith.constant dense<0.000000e+00> : vector<1x168xf32>
    %395 = tpu.matmul %394, %7, %cst_88 {dimension_numbers = #tpu.dot_dimension_numbers<[1], [0], [0], [1], [0, 0, 1, 1], [], []>} : vector<1x32xf32>, vector<32x168xf32>, vector<1x168xf32> -> vector<1x168xf32>
    %396 = arith.addf %395, %8 : vector<1x168xf32>
    %397 = vector.extract_strided_slice %396 {offsets = [0, 0], sizes = [1, 8], strides = [1, 1]} : vector<1x168xf32> to vector<1x8xf32>
    %c7_i32 = arith.constant 7 : i32
    %398 = vector.broadcast %c7_i32 : i32 to vector<8x8xi32>
    %399 = arith.cmpi eq, %14, %398 : vector<8x8xi32>
    %400 = vector.shape_cast %397 : vector<1x8xf32> to vector<1x8xf32>
    %401 = vector.broadcast %400 : vector<1x8xf32> to vector<8x8xf32>
    %402 = arith.select %399, %401, %357 : vector<8x8xi1>, vector<8x8xf32>
    %c0_89 = arith.constant 0 : index
    %c0_90 = arith.constant 0 : index
    %403 = vector.load %arg9[%c0_89, %c0_90] : memref<8x8xf32, #tpu.memory_space<vmem>>, vector<8x8xf32>
    tpu.vector_store %arg9[%c0_89, %c0_90], %402 {strides = array<i32>} : memref<8x8xf32, #tpu.memory_space<vmem>>, vector<8x8xf32>,
    %cst_91 = arith.constant 0.000000e+00 : f32
    %404 = vector.broadcast %cst_91 : f32 to vector<8x8xf32>
    %405 = arith.cmpf ogt, %402, %404 : vector<8x8xf32>
    %406 = arith.extui %405 : vector<8x8xi1> to vector<8x8xi32>
    %407 = arith.sitofp %406 : vector<8x8xi32> to vector<8x8xf32>
    %c0_92 = arith.constant 0 : index
    %c0_93 = arith.constant 0 : index
    %408 = vector.load %arg10[%c0_92, %c0_93] : memref<8x8xf32, #tpu.memory_space<vmem>>, vector<8x8xf32>
    tpu.vector_store %arg10[%c0_92, %c0_93], %407 {strides = array<i32>} : memref<8x8xf32, #tpu.memory_space<vmem>>, vector<8x8xf32>,
    return
  }
  func.func @transform_0(%arg0: i32) -> (i32, i32) {
    %c0_i32 = arith.constant 0 : i32
    %c0_i32_0 = arith.constant 0 : i32
    %c0_i32_1 = arith.constant 0 : i32
    return %c0_i32, %c0_i32_0 : i32, i32
  }
  func.func @transform_1(%arg0: i32) -> (i32, i32) {
    %c0_i32 = arith.constant 0 : i32
    %c0_i32_0 = arith.constant 0 : i32
    %c0_i32_1 = arith.constant 0 : i32
    return %c0_i32, %c0_i32_0 : i32, i32
  }
  func.func @transform_2(%arg0: i32) -> (i32, i32) {
    %c0_i32 = arith.constant 0 : i32
    %c0_i32_0 = arith.constant 0 : i32
    %c0_i32_1 = arith.constant 0 : i32
    return %c0_i32, %c0_i32_0 : i32, i32
  }
  func.func @transform_3(%arg0: i32) -> (i32, i32) {
    %c0_i32 = arith.constant 0 : i32
    %c0_i32_0 = arith.constant 0 : i32
    %c0_i32_1 = arith.constant 0 : i32
    return %c0_i32, %c0_i32_0 : i32, i32
  }
  func.func @transform_4(%arg0: i32) -> (i32, i32) {
    %c0_i32 = arith.constant 0 : i32
    %c0_i32_0 = arith.constant 0 : i32
    %c0_i32_1 = arith.constant 0 : i32
    return %c0_i32, %c0_i32_0 : i32, i32
  }
  func.func @transform_5(%arg0: i32) -> (i32, i32) {
    %c0_i32 = arith.constant 0 : i32
    %c0_i32_0 = arith.constant 0 : i32
    %c0_i32_1 = arith.constant 0 : i32
    return %c0_i32, %c0_i32_0 : i32, i32
  }
  func.func @transform_6(%arg0: i32) -> (i32, i32) {
    %c0_i32 = arith.constant 0 : i32
    %c0_i32_0 = arith.constant 0 : i32
    %c0_i32_1 = arith.constant 0 : i32
    return %c0_i32, %c0_i32_0 : i32, i32
  }
  func.func @transform_7(%arg0: i32) -> (i32, i32) {
    %c0_i32 = arith.constant 0 : i32
    %c0_i32_0 = arith.constant 0 : i32
    %c0_i32_1 = arith.constant 0 : i32
    return %c0_i32, %c0_i32_0 : i32, i32
  }
  func.func @transform_8(%arg0: i32) -> (i32, i32) {
    %c0_i32 = arith.constant 0 : i32
    %c0_i32_0 = arith.constant 0 : i32
    %c0_i32_1 = arith.constant 0 : i32
    return %c0_i32, %c0_i32_0 : i32, i32
  }
  func.func @transform_9(%arg0: i32) -> (i32, i32) {
    %c0_i32 = arith.constant 0 : i32
    %c0_i32_0 = arith.constant 0 : i32
    %c0_i32_1 = arith.constant 0 : i32
    return %c0_i32, %c0_i32_0 : i32, i32
  }
}

</mosaic_0001>

<llo_original>
// kernel: tpu_custom_call.1
$region0: #{tpu_custom_call.1}
  #allocation0 [shape = 'u32[]', space=smem, size = 0x4, offset = 0x4, fixed_abs, tag = 'smem constant byte address 0x4 - core index']
  #allocation1 [shape = 'u32[144,128]{1,0:T(1,128)}', space=vmem, size = 0x12000, scoped, tag = 'internal scratch']
  #allocation2 [shape = 'f32[8,192]{1,0:T(8,128)}', space=vmem, size = 0x2000, scoped, tag = 'scratch operand']
  %s0 = inlined_call_operand.hbm [shape: f32[8,32], index: 0, kind: input, shape index: {}]
  %s1 = inlined_call_operand.hbm [shape: f32[32,192], index: 1, kind: input, shape index: {}]
  %s2 = inlined_call_operand.vmem [shape: f32[1,192], index: 2, kind: input, shape index: {}]
  %s3 = inlined_call_operand.hbm [shape: f32[32,168], index: 3, kind: input, shape index: {}]
  %s4 = inlined_call_operand.vmem [shape: f32[1,168], index: 4, kind: input, shape index: {}]
  %s5 = inlined_call_operand.hbm [shape: f32[8,200], index: 5, kind: input, shape index: {}]
  %s6 = inlined_call_operand.vmem [shape: f32[1,192], index: 6, kind: input, shape index: {}]
  %s7 = inlined_call_operand.vmem [shape: f32[1,192], index: 7, kind: input, shape index: {}]
  %s8 = inlined_call_operand.hbm [shape: f32[8,8], index: 8, kind: output, shape index: {0}]
  %s9 = inlined_call_operand.hbm [shape: f32[8,8], index: 9, kind: output, shape index: {1}]
  %10 = xla_tuple %s8, %s9
  %s11 = sld [smem:[#allocation0]]
  $region66: #{tpu_custom_call.1} parent=0
    _
  %s13 = ssub.s32 1, %s11
  %s14 = scalar_select 0, %s13, %s11
  $region1: #{tpu_custom_call.1} parent=0
    #allocation3 [shape = 'u8[4096]{0}', space=vmem, size = 0x1000, scoped, tag = 'input window, operand 0, single buffered']
    #allocation4 [shape = 's32[1]{0}', space=sflag, size = 0x4, scoped, tag = 'scoped memory for tpu_custom_call.1']
    #allocation5 [shape = 's32[1]{0}', space=sflag, size = 0x4, scoped, tag = 'scoped memory for tpu_custom_call.1']
    #allocation6 [shape = 'u8[32768]{0}', space=vmem, size = 0x8000, scoped, tag = 'input window, operand 1, single buffered']
    #allocation7 [shape = 's32[1]{0}', space=sflag, size = 0x4, scoped, tag = 'scoped memory for tpu_custom_call.1']
    #allocation8 [shape = 'u8[32768]{0}', space=vmem, size = 0x8000, scoped, tag = 'input window, operand 3, single buffered']
    #allocation9 [shape = 'u8[8192]{0}', space=vmem, size = 0x2000, scoped, tag = 'input window, operand 5, single buffered']
    #allocation10 [shape = 's32[1]{0}', space=sflag, size = 0x4, scoped, tag = 'scoped memory for tpu_custom_call.1']
    #allocation11 [shape = 'u8[4096]{0}', space=vmem, size = 0x1000, scoped, tag = 'output window, operand 0, single buffered']
    #allocation12 [shape = 'u8[4096]{0}', space=vmem, size = 0x1000, scoped, tag = 'output window, operand 1, single buffered']
    #allocation13 [shape = 's32[1]{0}', space=sflag, size = 0x4, scoped, tag = 'scoped memory for tpu_custom_call.1']
    %15 = vsyncpa [#allocation4], 0
    %16 = vsyncpa [#allocation7], 0
    %17 = vsyncpa [#allocation10], 0
    %18 = vsyncpa [#allocation5], 0
    %19 = vsyncpa [#allocation13], 0
    // Predicated region
    $region2: #{tpu_custom_call.1} parent=1 // pred_check
      _
    $region3: #{tpu_custom_call.1} parent=1 // pred_check_branch
      %21 = sbr.rel (0) target = $region5
    $region4: #{tpu_custom_call.1} parent=1 // pred_region
      %s23 = ssub.s32 128, 128
      %24 = vsyncadd [#allocation4], %s23
      %s26 = sshll.u32 [#allocation3], 4
      %s27 = int_to_ptr.vmem [resolvable:$true] %s26
      %29 = dma.hbm_to_vmem [thread:$0]  %s0, 128, %s27, [#allocation4]
    $region5: #{tpu_custom_call.1} parent=1 // pred_fallthru
      _
    // Predicated region
    $region6: #{tpu_custom_call.1} parent=1 // pred_check
      _
    $region7: #{tpu_custom_call.1} parent=1 // pred_check_branch
      %31 = sbr.rel (0) target = $region9
    $region8: #{tpu_custom_call.1} parent=1 // pred_region
      %s33 = ssub.s32 1024, 1024
      %34 = vsyncadd [#allocation7], %s33
      %s35 = sshll.u32 [#allocation6], 4
      %s36 = int_to_ptr.vmem [resolvable:$true] %s35
      %41 = dma.hbm_to_vmem [thread:$0]  %s1, 1024, %s36, [#allocation7], 256, 256, 16
    $region9: #{tpu_custom_call.1} parent=1 // pred_fallthru
      _
    // Predicated region
    $region10: #{tpu_custom_call.1} parent=1 // pred_check
      _
    $region11: #{tpu_custom_call.1} parent=1 // pred_check_branch
      %43 = sbr.rel (0) target = $region13
    $region12: #{tpu_custom_call.1} parent=1 // pred_region
      _
    $region13: #{tpu_custom_call.1} parent=1 // pred_fallthru
      _
    // Predicated region
    $region14: #{tpu_custom_call.1} parent=1 // pred_check
      _
    $region15: #{tpu_custom_call.1} parent=1 // pred_check_branch
      %45 = sbr.rel (0) target = $region17
    $region16: #{tpu_custom_call.1} parent=1 // pred_region
      %s47 = ssub.s32 1024, 1024
      %48 = vsyncadd [#allocation7], %s47
      %s49 = sshll.u32 [#allocation8], 4
      %s50 = int_to_ptr.vmem [resolvable:$true] %s49
      %55 = dma.hbm_to_vmem [thread:$0]  %s3, 1024, %s50, [#allocation7], 256, 256, 16
    $region17: #{tpu_custom_call.1} parent=1 // pred_fallthru
      _
    // Predicated region
    $region18: #{tpu_custom_call.1} parent=1 // pred_check
      _
    $region19: #{tpu_custom_call.1} parent=1 // pred_check_branch
      %57 = sbr.rel (0) target = $region21
    $region20: #{tpu_custom_call.1} parent=1 // pred_region
      _
    $region21: #{tpu_custom_call.1} parent=1 // pred_fallthru
      _
    // Predicated region
    $region22: #{tpu_custom_call.1} parent=1 // pred_check
      _
    $region23: #{tpu_custom_call.1} parent=1 // pred_check_branch
      %59 = sbr.rel (0) target = $region25
    $region24: #{tpu_custom_call.1} parent=1 // pred_region
      %s61 = ssub.s32 256, 256
      %62 = vsyncadd [#allocation10], %s61
      %s64 = sshll.u32 [#allocation9], 4
      %s65 = int_to_ptr.vmem [resolvable:$true] %s64
      %67 = dma.hbm_to_vmem [thread:$0]  %s5, 256, %s65, [#allocation10]
    $region25: #{tpu_custom_call.1} parent=1 // pred_fallthru
      _
    // Predicated region
    $region26: #{tpu_custom_call.1} parent=1 // pred_check
      _
    $region27: #{tpu_custom_call.1} parent=1 // pred_check_branch
      %69 = sbr.rel (0) target = $region29
    $region28: #{tpu_custom_call.1} parent=1 // pred_region
      _
    $region29: #{tpu_custom_call.1} parent=1 // pred_fallthru
      _
    // Predicated region
    $region30: #{tpu_custom_call.1} parent=1 // pred_check
      _
    $region31: #{tpu_custom_call.1} parent=1 // pred_check_branch
      %71 = sbr.rel (0) target = $region33
    $region32: #{tpu_custom_call.1} parent=1 // pred_region
      _
    $region33: #{tpu_custom_call.1} parent=1 // pred_fallthru
      _
    // Predicated region
    $region34: #{tpu_custom_call.1} parent=1 // pred_check
      _
    $region35: #{tpu_custom_call.1} parent=1 // pred_check_branch
      %73 = sbr.rel (0) target = $region37
    $region36: #{tpu_custom_call.1} parent=1 // pred_region
      %74 = dma.done [#allocation4], 128
    $region37: #{tpu_custom_call.1} parent=1 // pred_fallthru
      _
    // Predicated region
    $region38: #{tpu_custom_call.1} parent=1 // pred_check
      _
    $region39: #{tpu_custom_call.1} parent=1 // pred_check_branch
      %76 = sbr.rel (0) target = $region41
    $region40: #{tpu_custom_call.1} parent=1 // pred_region
      %77 = dma.done [#allocation7], 1024
    $region41: #{tpu_custom_call.1} parent=1 // pred_fallthru
      _
    // Predicated region
    $region42: #{tpu_custom_call.1} parent=1 // pred_check
      _
    $region43: #{tpu_custom_call.1} parent=1 // pred_check_branch
      %79 = sbr.rel (0) target = $region45
    $region44: #{tpu_custom_call.1} parent=1 // pred_region
      %80 = dma.done [#allocation7], 1024
    $region45: #{tpu_custom_call.1} parent=1 // pred_fallthru
      _
    // Predicated region
    $region46: #{tpu_custom_call.1} parent=1 // pred_check
      _
    $region47: #{tpu_custom_call.1} parent=1 // pred_check_branch
      %82 = sbr.rel (0) target = $region49
    $region48: #{tpu_custom_call.1} parent=1 // pred_region
      %83 = dma.done [#allocation10], 256
    $region49: #{tpu_custom_call.1} parent=1 // pred_fallthru
      _
    %v84 = vld [vmem:[#allocation3] sm:$0xff]
    %v85 = vld [vmem:[#allocation6] sm:$0xff]
    %v86 = vld [vmem:[#allocation6 + $0x8] sm:$0xff]
    %v87 = vld [vmem:[#allocation6 + $0x10] sm:$0xff]
    %v88 = vld [vmem:[#allocation6 + $0x18] sm:$0xff]
    %v89 = vld [vmem:[#allocation6 + $0x20] sm:$0xff]
    %v90 = vld [vmem:[#allocation6 + $0x28] sm:$0xff]
    %v91 = vld [vmem:[#allocation6 + $0x30] sm:$0xff]
    %v92 = vld [vmem:[#allocation6 + $0x38] sm:$0xff]
    %v93 = vld [vmem:[%s2] sm:$0x3]
    %v95 = vlaneseq
    %v96 = vshrl.u32 %v95, 7
    %v97 = vsub.s32 0, %v96
    %v98 = vrot.slane %v93, %v97
    %v99 = vlaneseq
    %v100 = vshrl.u32 %v99, 7
    %v101 = vsub.s32 1, %v100
    %v102 = vrot.slane %v93, %v101
    %vm105 = vcmask 261120
    %v107 = vsel %vm105, %v84, 0
    %109 = vmatprep.subr.mxu0 0.0
    %110 = vmatpush1.msra.mxu0 0.0
    %111 = vmatprep.subr.mxu0 0.0
    %112 = vmatpush1.msra.mxu0 0.0
    %113 = vmatprep.subr.mxu0 0.0
    %114 = vmatpush1.msra.mxu0 0.0
    %115 = vmatprep.subr.mxu0 0.0
    %116 = vmatpush1.msra.mxu0 0.0
    %117 = vmatprep.subr.mxu0 0.0
    %118 = vmatpush1.msra.mxu0 0.0
    %119 = vmatprep.subr.mxu0 0.0
    %120 = vmatpush1.msra.mxu0 0.0
    %121 = vmatprep.subr.mxu0 0.0
    %122 = vmatpush1.msra.mxu0 0.0
    %123 = vmatprep.subr.mxu0 0.0
    %124 = vmatpush1.msra.mxu0 0.0
    %125 = vmatprep.subr.mxu0 0.0
    %126 = vmatpush1.msra.mxu0 0.0
    %127 = vmatprep.subr.mxu0 0.0
    %128 = vmatpush1.msra.mxu0 0.0
    %129 = vmatprep.subr.mxu0 0.0
    %130 = vmatpush1.msra.mxu0 0.0
    %131 = vmatprep.subr.mxu0 0.0
    %132 = vmatpush1.msra.mxu0 0.0
    %133 = vmatprep.subr.mxu0 %v92
    %134 = vmatpush1.msra.mxu0 %v91
    %135 = vmatprep.subr.mxu0 %v90
    %136 = vmatpush1.msra.mxu0 %v89
    %137 = vmatprep.subr.mxu0 %v88
    %138 = vmatpush1.msra.mxu0 %v87
    %139 = vmatprep.subr.mxu0 %v86
    %140 = vmatpush1.msra.mxu0 %v85
    %141 = vmatprep.subr.mxu0 0.0
    %142 = vmatpush2.msra.mxu0 0.0
    %143 = vmatprep.subr.mxu0 0.0
    %144 = vmatpush2.msra.mxu0 0.0
    %145 = vmatprep.subr.mxu0 0.0
    %146 = vmatpush2.msra.mxu0 0.0
    %147 = vmatprep.subr.mxu0 0.0
    %148 = vmatpush2.msra.mxu0 0.0
    %149 = vmatprep.subr.mxu0 0.0
    %150 = vmatpush2.msra.mxu0 0.0
    %151 = vmatprep.subr.mxu0 0.0
    %152 = vmatpush2.msra.mxu0 0.0
    %153 = vmatprep.subr.mxu0 0.0
    %154 = vmatpush2.msra.mxu0 0.0
    %155 = vmatprep.subr.mxu0 0.0
    %156 = vmatpush2.msra.mxu0 0.0
    %157 = vmatprep.subr.mxu0 0.0
    %158 = vmatpush2.msra.mxu0 0.0
    %159 = vmatprep.subr.mxu0 0.0
    %160 = vmatpush2.msra.mxu0 0.0
    %161 = vmatprep.subr.mxu0 0.0
    %162 = vmatpush2.msra.mxu0 0.0
    %163 = vmatprep.subr.mxu0 0.0
    %164 = vmatpush2.msra.mxu0 0.0
    %165 = vmatprep.subr.mxu0 0.0
    %166 = vmatpush2.msra.mxu0 0.0
    %167 = vmatprep.subr.mxu0 0.0
    %168 = vmatpush2.msra.mxu0 0.0
    %169 = vmatprep.subr.mxu0 0.0
    %170 = vmatpush2.msra.mxu0 0.0
    %171 = vmatprep.subr.mxu0 0.0
    %172 = vmatpush2.msra.mxu0 0.0
    %173 = vmatprep.mubr.f32.mxu0 0.0
    %174 = vmatmul.mubr.f32.gmra.mxu0 %v107
    %v175 = vpop.f32.mrf.mxu0
    %v176 = vadd.f32 %v98, %v175
    %v177 = vpop.f32.mrf.mxu0
    %v178 = vadd.f32 %v102, %v177
    %179 = vdwg.mxu0
    %180 = vst [vmem:[#allocation2] sm:$0xff] %v176
    %vm181 = vcmask 523264
    %182 = vst.msk [vmem:[#allocation2 + $0x8] sm:$0xff] %vm181, %v178
    %v183 = vld [vmem:[#allocation8] sm:$0xff]
    %v184 = vld [vmem:[#allocation8 + $0x8] sm:$0xff]
    %v185 = vld [vmem:[#allocation8 + $0x10] sm:$0xff]
    %v186 = vld [vmem:[#allocation8 + $0x18] sm:$0xff]
    %v187 = vld [vmem:[#allocation8 + $0x20] sm:$0xff]
    %v188 = vld [vmem:[#allocation8 + $0x28] sm:$0xff]
    %v189 = vld [vmem:[#allocation8 + $0x30] sm:$0xff]
    %v190 = vld [vmem:[#allocation8 + $0x38] sm:$0xff]
    %v191 = vld [vmem:[%s4] sm:$0x3]
    %v192 = vld [vmem:[#allocation9] sm:$0xff]
    %v193 = vld [vmem:[#allocation9 + $0x8] sm:$0xff]
    %v194 = vld [vmem:[%s7] sm:$0x3]
    %v195 = vld [vmem:[%s6] sm:$0x3]
    %v196 = vlaneseq
    %v197 = vshrl.u32 %v196, 7
    %v198 = vld [vmem:[#allocation2] ss:$8 sm:$0x3]
    %v199 = vadd.f32 %v198, %v195
    %201 = vrot.lane.b32.xlu0 %v191, 120
    %v202 = vpop.permute.xlu0 %201
    %v203 = vrot.slane %v202, 1
    %vm204 = vcmask 982016
    %v205 = vsel %vm204, %v202, %v203
    %v207 = vadd.f32 %v199, %v205
    %v208 = vxor.u32 %v207, 2147483648
    %v209 = vmul.f32 %v208, 1.442695
    %v210 = vpow.pop %v209
    %v211 = vadd.f32 %v210, 1.0
    %v212 = vrcp.pop %v211
    %v213 = vmul.f32 1.0, %v212
    %v215 = vrot.slane %v213, 1
    %v217 = vmul.f32 %v215, 2.0
    %v218 = vsub.f32 %v217, 1.0
    %v219 = vmul.f32 %v213, %v218
    %v220 = vmul.f32 %v213, 0.0
    %222 = vrot.lane.b32.xlu0 %v220, 96
    %v223 = vpop.permute.xlu0 %222
    %v225 = vadd.f32 %v219, %v223
    %v226 = vtanh.pop %v225
    %228 = vrot.lane.b32.xlu0 %v226, 64
    %v229 = vpop.permute.xlu0 %228
    %v231 = vmul.f32 %v213, %v229
    %233 = vrot.lane.b32.xlu0 %v231, 32
    %v234 = vpop.permute.xlu0 %233
    %v236 = vmul.f32 %v213, %v234
    %v237 = vsub.f32 1.0, %v213
    %239 = vrot.lane.b32.xlu0 %v199, 64
    %v240 = vpop.permute.xlu0 %239
    %v241 = vrot.slane %v240, 1
    %v242 = vsel %vm181, %v240, %v241
    %v244 = vmul.f32 %v237, %v242
    %v245 = vadd.f32 %v236, %v244
    %v247 = vlaneseq
    %v248 = vshrl.u32 %v247, 7
    %v249 = vsub.s32 0, %v248
    %v250 = vrot.slane %v245, %v249
    %251 = vrot.lane.b32.xlu0 %v250, 32
    %v252 = vpop.permute.xlu0 %251
    %v253 = vlaneseq
    %v254 = vshrl.u32 %v253, 7
    %v255 = vsub.s32 0, %v254
    %v256 = vrot.slane %v191, %v255
    %v257 = vlaneseq
    %v258 = vshrl.u32 %v257, 7
    %v259 = vsub.s32 1, %v258
    %v260 = vrot.slane %v191, %v259
    %v263 = vsel %vm105, %v252, 0
    %265 = vmatprep.subr.mxu0 0.0
    %266 = vmatpush1.msra.mxu0 0.0
    %267 = vmatprep.subr.mxu0 0.0
    %268 = vmatpush1.msra.mxu0 0.0
    %269 = vmatprep.subr.mxu0 0.0
    %270 = vmatpush1.msra.mxu0 0.0
    %271 = vmatprep.subr.mxu0 0.0
    %272 = vmatpush1.msra.mxu0 0.0
    %273 = vmatprep.subr.mxu0 0.0
    %274 = vmatpush1.msra.mxu0 0.0
    %275 = vmatprep.subr.mxu0 0.0
    %276 = vmatpush1.msra.mxu0 0.0
    %277 = vmatprep.subr.mxu0 0.0
    %278 = vmatpush1.msra.mxu0 0.0
    %279 = vmatprep.subr.mxu0 0.0
    %280 = vmatpush1.msra.mxu0 0.0
    %281 = vmatprep.subr.mxu0 0.0
    %282 = vmatpush1.msra.mxu0 0.0
    %283 = vmatprep.subr.mxu0 0.0
    %284 = vmatpush1.msra.mxu0 0.0
    %285 = vmatprep.subr.mxu0 0.0
    %286 = vmatpush1.msra.mxu0 0.0
    %287 = vmatprep.subr.mxu0 0.0
    %288 = vmatpush1.msra.mxu0 0.0
    %289 = vmatprep.subr.mxu0 %v190
    %290 = vmatpush1.msra.mxu0 %v189
    %291 = vmatprep.subr.mxu0 %v188
    %292 = vmatpush1.msra.mxu0 %v187
    %293 = vmatprep.subr.mxu0 %v186
    %294 = vmatpush1.msra.mxu0 %v185
    %295 = vmatprep.subr.mxu0 %v184
    %296 = vmatpush1.msra.mxu0 %v183
    %297 = vmatprep.subr.mxu0 0.0
    %298 = vmatpush2.msra.mxu0 0.0
    %299 = vmatprep.subr.mxu0 0.0
    %300 = vmatpush2.msra.mxu0 0.0
    %301 = vmatprep.subr.mxu0 0.0
    %302 = vmatpush2.msra.mxu0 0.0
    %303 = vmatprep.subr.mxu0 0.0
    %304 = vmatpush2.msra.mxu0 0.0
    %305 = vmatprep.subr.mxu0 0.0
    %306 = vmatpush2.msra.mxu0 0.0
    %307 = vmatprep.subr.mxu0 0.0
    %308 = vmatpush2.msra.mxu0 0.0
    %309 = vmatprep.subr.mxu0 0.0
    %310 = vmatpush2.msra.mxu0 0.0
    %311 = vmatprep.subr.mxu0 0.0
    %312 = vmatpush2.msra.mxu0 0.0
    %313 = vmatprep.subr.mxu0 0.0
    %314 = vmatpush2.msra.mxu0 0.0
    %315 = vmatprep.subr.mxu0 0.0
    %316 = vmatpush2.msra.mxu0 0.0
    %317 = vmatprep.subr.mxu0 0.0
    %318 = vmatpush2.msra.mxu0 0.0
    %319 = vmatprep.subr.mxu0 0.0
    %320 = vmatpush2.msra.mxu0 0.0
    %321 = vmatprep.subr.mxu0 0.0
    %322 = vmatpush2.msra.mxu0 0.0
    %323 = vmatprep.subr.mxu0 0.0
    %324 = vmatpush2.msra.mxu0 0.0
    %325 = vmatprep.subr.mxu0 0.0
    %326 = vmatpush2.msra.mxu0 0.0
    %327 = vmatprep.subr.mxu0 0.0
    %328 = vmatpush2.msra.mxu0 0.0
    %329 = vmatprep.mubr.f32.mxu0 0.0
    %330 = vmatmul.mubr.f32.gmra.mxu0 %v263
    %v331 = vpop.f32.mrf.mxu0
    %v332 = vadd.f32 %v256, %v331
    %v333 = vpop.f32.mrf.mxu0
    %v334 = vadd.f32 %v260, %v333
    %335 = vdwg.mxu0
    %vm336 = vcmp.gt.f32.partialorder %v332, 0.0
    %v337 = vsel %vm336, 1, 0
    %v338 = vcvt.s32.f32 %v337
    %vm339 = vcmp.eq.s32.totalorder %v197, 0
    %v340 = vlaneseq
    %v341 = vshrl.u32 %v340, 7
    %v342 = vsub.s32 0, %v341
    %v343 = vrot.slane %v332, %v342
    %v344 = vsel %vm339, %v343, 0.0
    %vm345 = vcmask 64512
    %v347 = vsel %vm345, %v338, 0
    %349 = vmatprep.subr.mxu0 0.0
    %350 = vmatpush1.msra.mxu0 0.0
    %351 = vmatprep.subr.mxu0 0.0
    %352 = vmatpush1.msra.mxu0 0.0
    %353 = vmatprep.subr.mxu0 0.0
    %354 = vmatpush1.msra.mxu0 0.0
    %355 = vmatprep.subr.mxu0 0.0
    %356 = vmatpush1.msra.mxu0 0.0
    %357 = vmatprep.subr.mxu0 0.0
    %358 = vmatpush1.msra.mxu0 0.0
    %359 = vmatprep.subr.mxu0 0.0
    %360 = vmatpush1.msra.mxu0 0.0
    %361 = vmatprep.subr.mxu0 0.0
    %362 = vmatpush1.msra.mxu0 0.0
    %363 = vmatprep.subr.mxu0 0.0
    %364 = vmatpush1.msra.mxu0 0.0
    %365 = vmatprep.subr.mxu0 0.0
    %366 = vmatpush1.msra.mxu0 0.0
    %367 = vmatprep.subr.mxu0 0.0
    %368 = vmatpush1.msra.mxu0 0.0
    %369 = vmatprep.subr.mxu0 0.0
    %370 = vmatpush1.msra.mxu0 0.0
    %371 = vmatprep.subr.mxu0 0.0
    %372 = vmatpush1.msra.mxu0 0.0
    %373 = vmatprep.subr.mxu0 0.0
    %374 = vmatpush1.msra.mxu0 0.0
    %375 = vmatprep.subr.mxu0 0.0
    %376 = vmatpush1.msra.mxu0 0.0
    %377 = vmatprep.subr.mxu0 0.0
    %378 = vmatpush1.msra.mxu0 0.0
    %379 = vmatprep.subr.mxu0 %v193
    %380 = vmatpush1.msra.mxu0 %v192
    %381 = vmatprep.subr.mxu0 0.0
    %382 = vmatpush2.msra.mxu0 0.0
    %383 = vmatprep.subr.mxu0 0.0
    %384 = vmatpush2.msra.mxu0 0.0
    %385 = vmatprep.subr.mxu0 0.0
    %386 = vmatpush2.msra.mxu0 0.0
    %387 = vmatprep.subr.mxu0 0.0
    %388 = vmatpush2.msra.mxu0 0.0
    %389 = vmatprep.subr.mxu0 0.0
    %390 = vmatpush2.msra.mxu0 0.0
    %391 = vmatprep.subr.mxu0 0.0
    %392 = vmatpush2.msra.mxu0 0.0
    %393 = vmatprep.subr.mxu0 0.0
    %394 = vmatpush2.msra.mxu0 0.0
    %395 = vmatprep.subr.mxu0 0.0
    %396 = vmatpush2.msra.mxu0 0.0
    %397 = vmatprep.subr.mxu0 0.0
    %398 = vmatpush2.msra.mxu0 0.0
    %399 = vmatprep.subr.mxu0 0.0
    %400 = vmatpush2.msra.mxu0 0.0
    %401 = vmatprep.subr.mxu0 0.0
    %402 = vmatpush2.msra.mxu0 0.0
    %403 = vmatprep.subr.mxu0 0.0
    %404 = vmatpush2.msra.mxu0 0.0
    %405 = vmatprep.subr.mxu0 0.0
    %406 = vmatpush2.msra.mxu0 0.0
    %407 = vmatprep.subr.mxu0 0.0
    %408 = vmatpush2.msra.mxu0 0.0
    %409 = vmatprep.subr.mxu0 0.0
    %410 = vmatpush2.msra.mxu0 0.0
    %411 = vmatprep.subr.mxu0 0.0
    %412 = vmatpush2.msra.mxu0 0.0
    %413 = vmatprep.mubr.f32.mxu0 0.0
    %414 = vmatmul.mubr.f32.gmra.mxu0 %v347
    %v415 = vpop.f32.mrf.mxu0
    %v416 = vadd.f32 0.0, %v415
    %v417 = vpop.f32.mrf.mxu0
    %v418 = vadd.f32 0.0, %v417
    %419 = vdwg.mxu0
    %vm420 = vcmp.gt.f32.partialorder %v418, 0.0
    %v421 = vsel %vm420, 1, 0
    %422 = vset.pattern.permute.xlu0 64
    %423 = vperm.xlu0 %422, %v421
    %v424 = vpop.permute.xlu0 %423
    %vm425 = vcmp.eq.s32.totalorder %v424, 1
    %v427 = vlaneseq
    %v428 = vshrl.u32 %v427, 7
    %v429 = vsub.s32 0, %v428
    %v430 = vrot.slane %v194, %v429
    %v431 = vlaneseq
    %v432 = vshrl.u32 %v431, 7
    %v433 = vsub.s32 1, %v432
    %v434 = vrot.slane %v194, %v433
    %v437 = vsel %vm425, %v416, %v430
    %v438 = vsel %vm425, %v418, %v434
    %s439 = scalar_lea.vmem [#allocation2], 1
    %v440 = vld [vmem:[%s439] ss:$8 sm:$0x3]
    %v443 = vcombine.low %v437, %v438
    %v445 = vunpack.c.l.s4 1966171168
    %v446 = vunpack.c.0.s8 %v445
    %v447 = vlaneseq
    %v448 = vshrl.u32 %v447, 7
    %v449 = vsub.s32 %v446, %v448
    %v450 = vrot.slane %v443, %v449
    %v452 = vunpack.c.l.s4 1966171168
    %v453 = vunpack.c.0.s8 %v452
    %v454 = vlaneseq
    %v455 = vshrl.u32 %v454, 7
    %v456 = vsub.s32 %v453, %v455
    %v457 = vrot.slane %v450, %v456
    %v459 = vadd.f32 %v440, %v457
    %v462 = vcombine.low %v332, %v334
    %v464 = vunpack.c.l.s4 1966171168
    %v465 = vunpack.c.0.s8 %v464
    %v466 = vlaneseq
    %v467 = vshrl.u32 %v466, 7
    %v468 = vsub.s32 %v465, %v467
    %v469 = vrot.slane %v462, %v468
    %v471 = vunpack.c.l.s4 1966171168
    %v472 = vunpack.c.0.s8 %v471
    %v473 = vlaneseq
    %v474 = vshrl.u32 %v473, 7
    %v475 = vsub.s32 %v472, %v474
    %v476 = vrot.slane %v469, %v475
    %477 = vrot.lane.b32.xlu0 %v476, 120
    %v478 = vpop.permute.xlu0 %477
    %v479 = vrot.slane %v478, 1
    %v480 = vsel %vm204, %v478, %v479
    %v482 = vadd.f32 %v459, %v480
    %v483 = vxor.u32 %v482, 2147483648
    %v484 = vmul.f32 %v483, 1.442695
    %v485 = vpow.pop %v484
    %v486 = vadd.f32 %v485, 1.0
    %v487 = vrcp.pop %v486
    %v488 = vmul.f32 1.0, %v487
    %v490 = vrot.slane %v488, 1
    %v492 = vmul.f32 %v490, 2.0
    %v493 = vsub.f32 %v492, 1.0
    %v494 = vmul.f32 %v488, %v493
    %496 = vrot.lane.b32.xlu0 %v225, 32
    %v497 = vpop.permute.xlu0 %496
    %v499 = vmul.f32 %v488, %v497
    %501 = vrot.lane.b32.xlu0 %v499, 96
    %v502 = vpop.permute.xlu0 %501
    %v504 = vadd.f32 %v494, %v502
    %v505 = vtanh.pop %v504
    %507 = vrot.lane.b32.xlu0 %v505, 64
    %v508 = vpop.permute.xlu0 %507
    %v510 = vmul.f32 %v488, %v508
    %512 = vrot.lane.b32.xlu0 %v510, 32
    %v513 = vpop.permute.xlu0 %512
    %v515 = vmul.f32 %v488, %v513
    %v516 = vsub.f32 1.0, %v488
    %518 = vrot.lane.b32.xlu0 %v459, 64
    %v519 = vpop.permute.xlu0 %518
    %v520 = vrot.slane %v519, 1
    %v521 = vsel %vm181, %v519, %v520
    %v523 = vmul.f32 %v516, %v521
    %v524 = vadd.f32 %v515, %v523
    %v526 = vlaneseq
    %v527 = vshrl.u32 %v526, 7
    %v528 = vsub.s32 0, %v527
    %v529 = vrot.slane %v524, %v528
    %530 = vrot.lane.b32.xlu0 %v529, 32
    %v531 = vpop.permute.xlu0 %530
    %v532 = vsel %vm105, %v531, 0
    %534 = vmatprep.subr.mxu0 0.0
    %535 = vmatpush1.msra.mxu0 0.0
    %536 = vmatprep.subr.mxu0 0.0
    %537 = vmatpush1.msra.mxu0 0.0
    %538 = vmatprep.subr.mxu0 0.0
    %539 = vmatpush1.msra.mxu0 0.0
    %540 = vmatprep.subr.mxu0 0.0
    %541 = vmatpush1.msra.mxu0 0.0
    %542 = vmatprep.subr.mxu0 0.0
    %543 = vmatpush1.msra.mxu0 0.0
    %544 = vmatprep.subr.mxu0 0.0
    %545 = vmatpush1.msra.mxu0 0.0
    %546 = vmatprep.subr.mxu0 0.0
    %547 = vmatpush1.msra.mxu0 0.0
    %548 = vmatprep.subr.mxu0 0.0
    %549 = vmatpush1.msra.mxu0 0.0
    %550 = vmatprep.subr.mxu0 0.0
    %551 = vmatpush1.msra.mxu0 0.0
    %552 = vmatprep.subr.mxu0 0.0
    %553 = vmatpush1.msra.mxu0 0.0
    %554 = vmatprep.subr.mxu0 0.0
    %555 = vmatpush1.msra.mxu0 0.0
    %556 = vmatprep.subr.mxu0 0.0
    %557 = vmatpush1.msra.mxu0 0.0
    %558 = vmatprep.subr.mxu0 %v190
    %559 = vmatpush1.msra.mxu0 %v189
    %560 = vmatprep.subr.mxu0 %v188
    %561 = vmatpush1.msra.mxu0 %v187
    %562 = vmatprep.subr.mxu0 %v186
    %563 = vmatpush1.msra.mxu0 %v185
    %564 = vmatprep.subr.mxu0 %v184
    %565 = vmatpush1.msra.mxu0 %v183
    %566 = vmatprep.subr.mxu0 0.0
    %567 = vmatpush2.msra.mxu0 0.0
    %568 = vmatprep.subr.mxu0 0.0
    %569 = vmatpush2.msra.mxu0 0.0
    %570 = vmatprep.subr.mxu0 0.0
    %571 = vmatpush2.msra.mxu0 0.0
    %572 = vmatprep.subr.mxu0 0.0
    %573 = vmatpush2.msra.mxu0 0.0
    %574 = vmatprep.subr.mxu0 0.0
    %575 = vmatpush2.msra.mxu0 0.0
    %576 = vmatprep.subr.mxu0 0.0
    %577 = vmatpush2.msra.mxu0 0.0
    %578 = vmatprep.subr.mxu0 0.0
    %579 = vmatpush2.msra.mxu0 0.0
    %580 = vmatprep.subr.mxu0 0.0
    %581 = vmatpush2.msra.mxu0 0.0
    %582 = vmatprep.subr.mxu0 0.0
    %583 = vmatpush2.msra.mxu0 0.0
    %584 = vmatprep.subr.mxu0 0.0
    %585 = vmatpush2.msra.mxu0 0.0
    %586 = vmatprep.subr.mxu0 0.0
    %587 = vmatpush2.msra.mxu0 0.0
    %588 = vmatprep.subr.mxu0 0.0
    %589 = vmatpush2.msra.mxu0 0.0
    %590 = vmatprep.subr.mxu0 0.0
    %591 = vmatpush2.msra.mxu0 0.0
    %592 = vmatprep.subr.mxu0 0.0
    %593 = vmatpush2.msra.mxu0 0.0
    %594 = vmatprep.subr.mxu0 0.0
    %595 = vmatpush2.msra.mxu0 0.0
    %596 = vmatprep.subr.mxu0 0.0
    %597 = vmatpush2.msra.mxu0 0.0
    %598 = vmatprep.mubr.f32.mxu0 0.0
    %599 = vmatmul.mubr.f32.gmra.mxu0 %v532
    %v600 = vpop.f32.mrf.mxu0
    %v601 = vadd.f32 %v256, %v600
    %v602 = vpop.f32.mrf.mxu0
    %v603 = vadd.f32 %v260, %v602
    %604 = vdwg.mxu0
    %vm605 = vcmp.gt.f32.partialorder %v601, 0.0
    %v606 = vsel %vm605, 1, 0
    %v607 = vcvt.s32.f32 %v606
    %vm608 = vcmp.eq.s32.totalorder %v197, 1
    %v609 = vlaneseq
    %v610 = vshrl.u32 %v609, 7
    %v611 = vsub.s32 0, %v610
    %v612 = vrot.slane %v601, %v611
    %v613 = vsel %vm608, %v612, %v344
    %v615 = vsel %vm345, %v607, 0
    %617 = vmatprep.subr.mxu0 0.0
    %618 = vmatpush1.msra.mxu0 0.0
    %619 = vmatprep.subr.mxu0 0.0
    %620 = vmatpush1.msra.mxu0 0.0
    %621 = vmatprep.subr.mxu0 0.0
    %622 = vmatpush1.msra.mxu0 0.0
    %623 = vmatprep.subr.mxu0 0.0
    %624 = vmatpush1.msra.mxu0 0.0
    %625 = vmatprep.subr.mxu0 0.0
    %626 = vmatpush1.msra.mxu0 0.0
    %627 = vmatprep.subr.mxu0 0.0
    %628 = vmatpush1.msra.mxu0 0.0
    %629 = vmatprep.subr.mxu0 0.0
    %630 = vmatpush1.msra.mxu0 0.0
    %631 = vmatprep.subr.mxu0 0.0
    %632 = vmatpush1.msra.mxu0 0.0
    %633 = vmatprep.subr.mxu0 0.0
    %634 = vmatpush1.msra.mxu0 0.0
    %635 = vmatprep.subr.mxu0 0.0
    %636 = vmatpush1.msra.mxu0 0.0
    %637 = vmatprep.subr.mxu0 0.0
    %638 = vmatpush1.msra.mxu0 0.0
    %639 = vmatprep.subr.mxu0 0.0
    %640 = vmatpush1.msra.mxu0 0.0
    %641 = vmatprep.subr.mxu0 0.0
    %642 = vmatpush1.msra.mxu0 0.0
    %643 = vmatprep.subr.mxu0 0.0
    %644 = vmatpush1.msra.mxu0 0.0
    %645 = vmatprep.subr.mxu0 0.0
    %646 = vmatpush1.msra.mxu0 0.0
    %647 = vmatprep.subr.mxu0 %v193
    %648 = vmatpush1.msra.mxu0 %v192
    %649 = vmatprep.subr.mxu0 0.0
    %650 = vmatpush2.msra.mxu0 0.0
    %651 = vmatprep.subr.mxu0 0.0
    %652 = vmatpush2.msra.mxu0 0.0
    %653 = vmatprep.subr.mxu0 0.0
    %654 = vmatpush2.msra.mxu0 0.0
    %655 = vmatprep.subr.mxu0 0.0
    %656 = vmatpush2.msra.mxu0 0.0
    %657 = vmatprep.subr.mxu0 0.0
    %658 = vmatpush2.msra.mxu0 0.0
    %659 = vmatprep.subr.mxu0 0.0
    %660 = vmatpush2.msra.mxu0 0.0
    %661 = vmatprep.subr.mxu0 0.0
    %662 = vmatpush2.msra.mxu0 0.0
    %663 = vmatprep.subr.mxu0 0.0
    %664 = vmatpush2.msra.mxu0 0.0
    %665 = vmatprep.subr.mxu0 0.0
    %666 = vmatpush2.msra.mxu0 0.0
    %667 = vmatprep.subr.mxu0 0.0
    %668 = vmatpush2.msra.mxu0 0.0
    %669 = vmatprep.subr.mxu0 0.0
    %670 = vmatpush2.msra.mxu0 0.0
    %671 = vmatprep.subr.mxu0 0.0
    %672 = vmatpush2.msra.mxu0 0.0
    %673 = vmatprep.subr.mxu0 0.0
    %674 = vmatpush2.msra.mxu0 0.0
    %675 = vmatprep.subr.mxu0 0.0
    %676 = vmatpush2.msra.mxu0 0.0
    %677 = vmatprep.subr.mxu0 0.0
    %678 = vmatpush2.msra.mxu0 0.0
    %679 = vmatprep.subr.mxu0 0.0
    %680 = vmatpush2.msra.mxu0 0.0
    %681 = vmatprep.mubr.f32.mxu0 0.0
    %682 = vmatmul.mubr.f32.gmra.mxu0 %v615
    %v683 = vpop.f32.mrf.mxu0
    %v684 = vadd.f32 0.0, %v683
    %v685 = vpop.f32.mrf.mxu0
    %v686 = vadd.f32 0.0, %v685
    %687 = vdwg.mxu0
    %vm688 = vcmp.gt.f32.partialorder %v686, 0.0
    %v689 = vsel %vm688, 1, 0
    %690 = vset.pattern.permute.xlu0 64
    %691 = vperm.xlu0 %690, %v689
    %v692 = vpop.permute.xlu0 %691
    %vm693 = vcmp.eq.s32.totalorder %v692, 1
    %v694 = vsel %vm693, %v684, %v430
    %v695 = vsel %vm693, %v686, %v434
    %s696 = scalar_lea.vmem [#allocation2], 2
    %v697 = vld [vmem:[%s696] ss:$8 sm:$0x3]
    %v700 = vcombine.low %v694, %v695
    %v702 = vunpack.c.l.s4 1966171168
    %v703 = vunpack.c.0.s8 %v702
    %v704 = vlaneseq
    %v705 = vshrl.u32 %v704, 7
    %v706 = vsub.s32 %v703, %v705
    %v707 = vrot.slane %v700, %v706
    %v709 = vunpack.c.l.s4 1966171168
    %v710 = vunpack.c.0.s8 %v709
    %v711 = vlaneseq
    %v712 = vshrl.u32 %v711, 7
    %v713 = vsub.s32 %v710, %v712
    %v714 = vrot.slane %v707, %v713
    %v716 = vadd.f32 %v697, %v714
    %v719 = vcombine.low %v601, %v603
    %v721 = vunpack.c.l.s4 1966171168
    %v722 = vunpack.c.0.s8 %v721
    %v723 = vlaneseq
    %v724 = vshrl.u32 %v723, 7
    %v725 = vsub.s32 %v722, %v724
    %v726 = vrot.slane %v719, %v725
    %v728 = vunpack.c.l.s4 1966171168
    %v729 = vunpack.c.0.s8 %v728
    %v730 = vlaneseq
    %v731 = vshrl.u32 %v730, 7
    %v732 = vsub.s32 %v729, %v731
    %v733 = vrot.slane %v726, %v732
    %734 = vrot.lane.b32.xlu0 %v733, 120
    %v735 = vpop.permute.xlu0 %734
    %v736 = vrot.slane %v735, 1
    %v737 = vsel %vm204, %v735, %v736
    %v739 = vadd.f32 %v716, %v737
    %v740 = vxor.u32 %v739, 2147483648
    %v741 = vmul.f32 %v740, 1.442695
    %v742 = vpow.pop %v741
    %v743 = vadd.f32 %v742, 1.0
    %v744 = vrcp.pop %v743
    %v745 = vmul.f32 1.0, %v744
    %v747 = vrot.slane %v745, 1
    %v749 = vmul.f32 %v747, 2.0
    %v750 = vsub.f32 %v749, 1.0
    %v751 = vmul.f32 %v745, %v750
    %753 = vrot.lane.b32.xlu0 %v504, 32
    %v754 = vpop.permute.xlu0 %753
    %v756 = vmul.f32 %v745, %v754
    %758 = vrot.lane.b32.xlu0 %v756, 96
    %v759 = vpop.permute.xlu0 %758
    %v761 = vadd.f32 %v751, %v759
    %v762 = vtanh.pop %v761
    %764 = vrot.lane.b32.xlu0 %v762, 64
    %v765 = vpop.permute.xlu0 %764
    %v767 = vmul.f32 %v745, %v765
    %769 = vrot.lane.b32.xlu0 %v767, 32
    %v770 = vpop.permute.xlu0 %769
    %v772 = vmul.f32 %v745, %v770
    %v773 = vsub.f32 1.0, %v745
    %775 = vrot.lane.b32.xlu0 %v716, 64
    %v776 = vpop.permute.xlu0 %775
    %v777 = vrot.slane %v776, 1
    %v778 = vsel %vm181, %v776, %v777
    %v780 = vmul.f32 %v773, %v778
    %v781 = vadd.f32 %v772, %v780
    %v783 = vlaneseq
    %v784 = vshrl.u32 %v783, 7
    %v785 = vsub.s32 0, %v784
    %v786 = vrot.slane %v781, %v785
    %787 = vrot.lane.b32.xlu0 %v786, 32
    %v788 = vpop.permute.xlu0 %787
    %v789 = vsel %vm105, %v788, 0
    %791 = vmatprep.subr.mxu0 0.0
    %792 = vmatpush1.msra.mxu0 0.0
    %793 = vmatprep.subr.mxu0 0.0
    %794 = vmatpush1.msra.mxu0 0.0
    %795 = vmatprep.subr.mxu0 0.0
    %796 = vmatpush1.msra.mxu0 0.0
    %797 = vmatprep.subr.mxu0 0.0
    %798 = vmatpush1.msra.mxu0 0.0
    %799 = vmatprep.subr.mxu0 0.0
    %800 = vmatpush1.msra.mxu0 0.0
    %801 = vmatprep.subr.mxu0 0.0
    %802 = vmatpush1.msra.mxu0 0.0
    %803 = vmatprep.subr.mxu0 0.0
    %804 = vmatpush1.msra.mxu0 0.0
    %805 = vmatprep.subr.mxu0 0.0
    %806 = vmatpush1.msra.mxu0 0.0
    %807 = vmatprep.subr.mxu0 0.0
    %808 = vmatpush1.msra.mxu0 0.0
    %809 = vmatprep.subr.mxu0 0.0
    %810 = vmatpush1.msra.mxu0 0.0
    %811 = vmatprep.subr.mxu0 0.0
    %812 = vmatpush1.msra.mxu0 0.0
    %813 = vmatprep.subr.mxu0 0.0
    %814 = vmatpush1.msra.mxu0 0.0
    %815 = vmatprep.subr.mxu0 %v190
    %816 = vmatpush1.msra.mxu0 %v189
    %817 = vmatprep.subr.mxu0 %v188
    %818 = vmatpush1.msra.mxu0 %v187
    %819 = vmatprep.subr.mxu0 %v186
    %820 = vmatpush1.msra.mxu0 %v185
    %821 = vmatprep.subr.mxu0 %v184
    %822 = vmatpush1.msra.mxu0 %v183
    %823 = vmatprep.subr.mxu0 0.0
    %824 = vmatpush2.msra.mxu0 0.0
    %825 = vmatprep.subr.mxu0 0.0
    %826 = vmatpush2.msra.mxu0 0.0
    %827 = vmatprep.subr.mxu0 0.0
    %828 = vmatpush2.msra.mxu0 0.0
    %829 = vmatprep.subr.mxu0 0.0
    %830 = vmatpush2.msra.mxu0 0.0
    %831 = vmatprep.subr.mxu0 0.0
    %832 = vmatpush2.msra.mxu0 0.0
    %833 = vmatprep.subr.mxu0 0.0
    %834 = vmatpush2.msra.mxu0 0.0
    %835 = vmatprep.subr.mxu0 0.0
    %836 = vmatpush2.msra.mxu0 0.0
    %837 = vmatprep.subr.mxu0 0.0
    %838 = vmatpush2.msra.mxu0 0.0
    %839 = vmatprep.subr.mxu0 0.0
    %840 = vmatpush2.msra.mxu0 0.0
    %841 = vmatprep.subr.mxu0 0.0
    %842 = vmatpush2.msra.mxu0 0.0
    %843 = vmatprep.subr.mxu0 0.0
    %844 = vmatpush2.msra.mxu0 0.0
    %845 = vmatprep.subr.mxu0 0.0
    %846 = vmatpush2.msra.mxu0 0.0
    %847 = vmatprep.subr.mxu0 0.0
    %848 = vmatpush2.msra.mxu0 0.0
    %849 = vmatprep.subr.mxu0 0.0
    %850 = vmatpush2.msra.mxu0 0.0
    %851 = vmatprep.subr.mxu0 0.0
    %852 = vmatpush2.msra.mxu0 0.0
    %853 = vmatprep.subr.mxu0 0.0
    %854 = vmatpush2.msra.mxu0 0.0
    %855 = vmatprep.mubr.f32.mxu0 0.0
    %856 = vmatmul.mubr.f32.gmra.mxu0 %v789
    %v857 = vpop.f32.mrf.mxu0
    %v858 = vadd.f32 %v256, %v857
    %v859 = vpop.f32.mrf.mxu0
    %v860 = vadd.f32 %v260, %v859
    %861 = vdwg.mxu0
    %vm862 = vcmp.gt.f32.partialorder %v858, 0.0
    %v863 = vsel %vm862, 1, 0
    %v864 = vcvt.s32.f32 %v863
    %vm865 = vcmp.eq.s32.totalorder %v197, 2
    %v866 = vlaneseq
    %v867 = vshrl.u32 %v866, 7
    %v868 = vsub.s32 0, %v867
    %v869 = vrot.slane %v858, %v868
    %v870 = vsel %vm865, %v869, %v613
    %v872 = vsel %vm345, %v864, 0
    %874 = vmatprep.subr.mxu0 0.0
    %875 = vmatpush1.msra.mxu0 0.0
    %876 = vmatprep.subr.mxu0 0.0
    %877 = vmatpush1.msra.mxu0 0.0
    %878 = vmatprep.subr.mxu0 0.0
    %879 = vmatpush1.msra.mxu0 0.0
    %880 = vmatprep.subr.mxu0 0.0
    %881 = vmatpush1.msra.mxu0 0.0
    %882 = vmatprep.subr.mxu0 0.0
    %883 = vmatpush1.msra.mxu0 0.0
    %884 = vmatprep.subr.mxu0 0.0
    %885 = vmatpush1.msra.mxu0 0.0
    %886 = vmatprep.subr.mxu0 0.0
    %887 = vmatpush1.msra.mxu0 0.0
    %888 = vmatprep.subr.mxu0 0.0
    %889 = vmatpush1.msra.mxu0 0.0
    %890 = vmatprep.subr.mxu0 0.0
    %891 = vmatpush1.msra.mxu0 0.0
    %892 = vmatprep.subr.mxu0 0.0
    %893 = vmatpush1.msra.mxu0 0.0
    %894 = vmatprep.subr.mxu0 0.0
    %895 = vmatpush1.msra.mxu0 0.0
    %896 = vmatprep.subr.mxu0 0.0
    %897 = vmatpush1.msra.mxu0 0.0
    %898 = vmatprep.subr.mxu0 0.0
    %899 = vmatpush1.msra.mxu0 0.0
    %900 = vmatprep.subr.mxu0 0.0
    %901 = vmatpush1.msra.mxu0 0.0
    %902 = vmatprep.subr.mxu0 0.0
    %903 = vmatpush1.msra.mxu0 0.0
    %904 = vmatprep.subr.mxu0 %v193
    %905 = vmatpush1.msra.mxu0 %v192
    %906 = vmatprep.subr.mxu0 0.0
    %907 = vmatpush2.msra.mxu0 0.0
    %908 = vmatprep.subr.mxu0 0.0
    %909 = vmatpush2.msra.mxu0 0.0
    %910 = vmatprep.subr.mxu0 0.0
    %911 = vmatpush2.msra.mxu0 0.0
    %912 = vmatprep.subr.mxu0 0.0
    %913 = vmatpush2.msra.mxu0 0.0
    %914 = vmatprep.subr.mxu0 0.0
    %915 = vmatpush2.msra.mxu0 0.0
    %916 = vmatprep.subr.mxu0 0.0
    %917 = vmatpush2.msra.mxu0 0.0
    %918 = vmatprep.subr.mxu0 0.0
    %919 = vmatpush2.msra.mxu0 0.0
    %920 = vmatprep.subr.mxu0 0.0
    %921 = vmatpush2.msra.mxu0 0.0
    %922 = vmatprep.subr.mxu0 0.0
    %923 = vmatpush2.msra.mxu0 0.0
    %924 = vmatprep.subr.mxu0 0.0
    %925 = vmatpush2.msra.mxu0 0.0
    %926 = vmatprep.subr.mxu0 0.0
    %927 = vmatpush2.msra.mxu0 0.0
    %928 = vmatprep.subr.mxu0 0.0
    %929 = vmatpush2.msra.mxu0 0.0
    %930 = vmatprep.subr.mxu0 0.0
    %931 = vmatpush2.msra.mxu0 0.0
    %932 = vmatprep.subr.mxu0 0.0
    %933 = vmatpush2.msra.mxu0 0.0
    %934 = vmatprep.subr.mxu0 0.0
    %935 = vmatpush2.msra.mxu0 0.0
    %936 = vmatprep.subr.mxu0 0.0
    %937 = vmatpush2.msra.mxu0 0.0
    %938 = vmatprep.mubr.f32.mxu0 0.0
    %939 = vmatmul.mubr.f32.gmra.mxu0 %v872
    %v940 = vpop.f32.mrf.mxu0
    %v941 = vadd.f32 0.0, %v940
    %v942 = vpop.f32.mrf.mxu0
    %v943 = vadd.f32 0.0, %v942
    %944 = vdwg.mxu0
    %vm945 = vcmp.gt.f32.partialorder %v943, 0.0
    %v946 = vsel %vm945, 1, 0
    %947 = vset.pattern.permute.xlu0 64
    %948 = vperm.xlu0 %947, %v946
    %v949 = vpop.permute.xlu0 %948
    %vm950 = vcmp.eq.s32.totalorder %v949, 1
    %v951 = vsel %vm950, %v941, %v430
    %v952 = vsel %vm950, %v943, %v434
    %s953 = scalar_lea.vmem [#allocation2], 3
    %v954 = vld [vmem:[%s953] ss:$8 sm:$0x3]
    %v957 = vcombine.low %v951, %v952
    %v959 = vunpack.c.l.s4 1966171168
    %v960 = vunpack.c.0.s8 %v959
    %v961 = vlaneseq
    %v962 = vshrl.u32 %v961, 7
    %v963 = vsub.s32 %v960, %v962
    %v964 = vrot.slane %v957, %v963
    %v966 = vunpack.c.l.s4 1966171168
    %v967 = vunpack.c.0.s8 %v966
    %v968 = vlaneseq
    %v969 = vshrl.u32 %v968, 7
    %v970 = vsub.s32 %v967, %v969
    %v971 = vrot.slane %v964, %v970
    %v973 = vadd.f32 %v954, %v971
    %v976 = vcombine.low %v858, %v860
    %v978 = vunpack.c.l.s4 1966171168
    %v979 = vunpack.c.0.s8 %v978
    %v980 = vlaneseq
    %v981 = vshrl.u32 %v980, 7
    %v982 = vsub.s32 %v979, %v981
    %v983 = vrot.slane %v976, %v982
    %v985 = vunpack.c.l.s4 1966171168
    %v986 = vunpack.c.0.s8 %v985
    %v987 = vlaneseq
    %v988 = vshrl.u32 %v987, 7
    %v989 = vsub.s32 %v986, %v988
    %v990 = vrot.slane %v983, %v989
    %991 = vrot.lane.b32.xlu0 %v990, 120
    %v992 = vpop.permute.xlu0 %991
    %v993 = vrot.slane %v992, 1
    %v994 = vsel %vm204, %v992, %v993
    %v996 = vadd.f32 %v973, %v994
    %v997 = vxor.u32 %v996, 2147483648
    %v998 = vmul.f32 %v997, 1.442695
    %v999 = vpow.pop %v998
    %v1000 = vadd.f32 %v999, 1.0
    %v1001 = vrcp.pop %v1000
    %v1002 = vmul.f32 1.0, %v1001
    %v1004 = vrot.slane %v1002, 1
    %v1006 = vmul.f32 %v1004, 2.0
    %v1007 = vsub.f32 %v1006, 1.0
    %v1008 = vmul.f32 %v1002, %v1007
    %1010 = vrot.lane.b32.xlu0 %v761, 32
    %v1011 = vpop.permute.xlu0 %1010
    %v1013 = vmul.f32 %v1002, %v1011
    %1015 = vrot.lane.b32.xlu0 %v1013, 96
    %v1016 = vpop.permute.xlu0 %1015
    %v1018 = vadd.f32 %v1008, %v1016
    %v1019 = vtanh.pop %v1018
    %1021 = vrot.lane.b32.xlu0 %v1019, 64
    %v1022 = vpop.permute.xlu0 %1021
    %v1024 = vmul.f32 %v1002, %v1022
    %1026 = vrot.lane.b32.xlu0 %v1024, 32
    %v1027 = vpop.permute.xlu0 %1026
    %v1029 = vmul.f32 %v1002, %v1027
    %v1030 = vsub.f32 1.0, %v1002
    %1032 = vrot.lane.b32.xlu0 %v973, 64
    %v1033 = vpop.permute.xlu0 %1032
    %v1034 = vrot.slane %v1033, 1
    %v1035 = vsel %vm181, %v1033, %v1034
    %v1037 = vmul.f32 %v1030, %v1035
    %v1038 = vadd.f32 %v1029, %v1037
    %v1040 = vlaneseq
    %v1041 = vshrl.u32 %v1040, 7
    %v1042 = vsub.s32 0, %v1041
    %v1043 = vrot.slane %v1038, %v1042
    %1044 = vrot.lane.b32.xlu0 %v1043, 32
    %v1045 = vpop.permute.xlu0 %1044
    %v1046 = vsel %vm105, %v1045, 0
    %1048 = vmatprep.subr.mxu0 0.0
    %1049 = vmatpush1.msra.mxu0 0.0
    %1050 = vmatprep.subr.mxu0 0.0
    %1051 = vmatpush1.msra.mxu0 0.0
    %1052 = vmatprep.subr.mxu0 0.0
    %1053 = vmatpush1.msra.mxu0 0.0
    %1054 = vmatprep.subr.mxu0 0.0
    %1055 = vmatpush1.msra.mxu0 0.0
    %1056 = vmatprep.subr.mxu0 0.0
    %1057 = vmatpush1.msra.mxu0 0.0
    %1058 = vmatprep.subr.mxu0 0.0
    %1059 = vmatpush1.msra.mxu0 0.0
    %1060 = vmatprep.subr.mxu0 0.0
    %1061 = vmatpush1.msra.mxu0 0.0
    %1062 = vmatprep.subr.mxu0 0.0
    %1063 = vmatpush1.msra.mxu0 0.0
    %1064 = vmatprep.subr.mxu0 0.0
    %1065 = vmatpush1.msra.mxu0 0.0
    %1066 = vmatprep.subr.mxu0 0.0
    %1067 = vmatpush1.msra.mxu0 0.0
    %1068 = vmatprep.subr.mxu0 0.0
    %1069 = vmatpush1.msra.mxu0 0.0
    %1070 = vmatprep.subr.mxu0 0.0
    %1071 = vmatpush1.msra.mxu0 0.0
    %1072 = vmatprep.subr.mxu0 %v190
    %1073 = vmatpush1.msra.mxu0 %v189
    %1074 = vmatprep.subr.mxu0 %v188
    %1075 = vmatpush1.msra.mxu0 %v187
    %1076 = vmatprep.subr.mxu0 %v186
    %1077 = vmatpush1.msra.mxu0 %v185
    %1078 = vmatprep.subr.mxu0 %v184
    %1079 = vmatpush1.msra.mxu0 %v183
    %1080 = vmatprep.subr.mxu0 0.0
    %1081 = vmatpush2.msra.mxu0 0.0
    %1082 = vmatprep.subr.mxu0 0.0
    %1083 = vmatpush2.msra.mxu0 0.0
    %1084 = vmatprep.subr.mxu0 0.0
    %1085 = vmatpush2.msra.mxu0 0.0
    %1086 = vmatprep.subr.mxu0 0.0
    %1087 = vmatpush2.msra.mxu0 0.0
    %1088 = vmatprep.subr.mxu0 0.0
    %1089 = vmatpush2.msra.mxu0 0.0
    %1090 = vmatprep.subr.mxu0 0.0
    %1091 = vmatpush2.msra.mxu0 0.0
    %1092 = vmatprep.subr.mxu0 0.0
    %1093 = vmatpush2.msra.mxu0 0.0
    %1094 = vmatprep.subr.mxu0 0.0
    %1095 = vmatpush2.msra.mxu0 0.0
    %1096 = vmatprep.subr.mxu0 0.0
    %1097 = vmatpush2.msra.mxu0 0.0
    %1098 = vmatprep.subr.mxu0 0.0
    %1099 = vmatpush2.msra.mxu0 0.0
    %1100 = vmatprep.subr.mxu0 0.0
    %1101 = vmatpush2.msra.mxu0 0.0
    %1102 = vmatprep.subr.mxu0 0.0
    %1103 = vmatpush2.msra.mxu0 0.0
    %1104 = vmatprep.subr.mxu0 0.0
    %1105 = vmatpush2.msra.mxu0 0.0
    %1106 = vmatprep.subr.mxu0 0.0
    %1107 = vmatpush2.msra.mxu0 0.0
    %1108 = vmatprep.subr.mxu0 0.0
    %1109 = vmatpush2.msra.mxu0 0.0
    %1110 = vmatprep.subr.mxu0 0.0
    %1111 = vmatpush2.msra.mxu0 0.0
    %1112 = vmatprep.mubr.f32.mxu0 0.0
    %1113 = vmatmul.mubr.f32.gmra.mxu0 %v1046
    %v1114 = vpop.f32.mrf.mxu0
    %v1115 = vadd.f32 %v256, %v1114
    %v1116 = vpop.f32.mrf.mxu0
    %v1117 = vadd.f32 %v260, %v1116
    %1118 = vdwg.mxu0
    %vm1119 = vcmp.gt.f32.partialorder %v1115, 0.0
    %v1120 = vsel %vm1119, 1, 0
    %v1121 = vcvt.s32.f32 %v1120
    %vm1122 = vcmp.eq.s32.totalorder %v197, 3
    %v1123 = vlaneseq
    %v1124 = vshrl.u32 %v1123, 7
    %v1125 = vsub.s32 0, %v1124
    %v1126 = vrot.slane %v1115, %v1125
    %v1127 = vsel %vm1122, %v1126, %v870
    %v1129 = vsel %vm345, %v1121, 0
    %1131 = vmatprep.subr.mxu0 0.0
    %1132 = vmatpush1.msra.mxu0 0.0
    %1133 = vmatprep.subr.mxu0 0.0
    %1134 = vmatpush1.msra.mxu0 0.0
    %1135 = vmatprep.subr.mxu0 0.0
    %1136 = vmatpush1.msra.mxu0 0.0
    %1137 = vmatprep.subr.mxu0 0.0
    %1138 = vmatpush1.msra.mxu0 0.0
    %1139 = vmatprep.subr.mxu0 0.0
    %1140 = vmatpush1.msra.mxu0 0.0
    %1141 = vmatprep.subr.mxu0 0.0
    %1142 = vmatpush1.msra.mxu0 0.0
    %1143 = vmatprep.subr.mxu0 0.0
    %1144 = vmatpush1.msra.mxu0 0.0
    %1145 = vmatprep.subr.mxu0 0.0
    %1146 = vmatpush1.msra.mxu0 0.0
    %1147 = vmatprep.subr.mxu0 0.0
    %1148 = vmatpush1.msra.mxu0 0.0
    %1149 = vmatprep.subr.mxu0 0.0
    %1150 = vmatpush1.msra.mxu0 0.0
    %1151 = vmatprep.subr.mxu0 0.0
    %1152 = vmatpush1.msra.mxu0 0.0
    %1153 = vmatprep.subr.mxu0 0.0
    %1154 = vmatpush1.msra.mxu0 0.0
    %1155 = vmatprep.subr.mxu0 0.0
    %1156 = vmatpush1.msra.mxu0 0.0
    %1157 = vmatprep.subr.mxu0 0.0
    %1158 = vmatpush1.msra.mxu0 0.0
    %1159 = vmatprep.subr.mxu0 0.0
    %1160 = vmatpush1.msra.mxu0 0.0
    %1161 = vmatprep.subr.mxu0 %v193
    %1162 = vmatpush1.msra.mxu0 %v192
    %1163 = vmatprep.subr.mxu0 0.0
    %1164 = vmatpush2.msra.mxu0 0.0
    %1165 = vmatprep.subr.mxu0 0.0
    %1166 = vmatpush2.msra.mxu0 0.0
    %1167 = vmatprep.subr.mxu0 0.0
    %1168 = vmatpush2.msra.mxu0 0.0
    %1169 = vmatprep.subr.mxu0 0.0
    %1170 = vmatpush2.msra.mxu0 0.0
    %1171 = vmatprep.subr.mxu0 0.0
    %1172 = vmatpush2.msra.mxu0 0.0
    %1173 = vmatprep.subr.mxu0 0.0
    %1174 = vmatpush2.msra.mxu0 0.0
    %1175 = vmatprep.subr.mxu0 0.0
    %1176 = vmatpush2.msra.mxu0 0.0
    %1177 = vmatprep.subr.mxu0 0.0
    %1178 = vmatpush2.msra.mxu0 0.0
    %1179 = vmatprep.subr.mxu0 0.0
    %1180 = vmatpush2.msra.mxu0 0.0
    %1181 = vmatprep.subr.mxu0 0.0
    %1182 = vmatpush2.msra.mxu0 0.0
    %1183 = vmatprep.subr.mxu0 0.0
    %1184 = vmatpush2.msra.mxu0 0.0
    %1185 = vmatprep.subr.mxu0 0.0
    %1186 = vmatpush2.msra.mxu0 0.0
    %1187 = vmatprep.subr.mxu0 0.0
    %1188 = vmatpush2.msra.mxu0 0.0
    %1189 = vmatprep.subr.mxu0 0.0
    %1190 = vmatpush2.msra.mxu0 0.0
    %1191 = vmatprep.subr.mxu0 0.0
    %1192 = vmatpush2.msra.mxu0 0.0
    %1193 = vmatprep.subr.mxu0 0.0
    %1194 = vmatpush2.msra.mxu0 0.0
    %1195 = vmatprep.mubr.f32.mxu0 0.0
    %1196 = vmatmul.mubr.f32.gmra.mxu0 %v1129
    %v1197 = vpop.f32.mrf.mxu0
    %v1198 = vadd.f32 0.0, %v1197
    %v1199 = vpop.f32.mrf.mxu0
    %v1200 = vadd.f32 0.0, %v1199
    %1201 = vdwg.mxu0
    %vm1202 = vcmp.gt.f32.partialorder %v1200, 0.0
    %v1203 = vsel %vm1202, 1, 0
    %1204 = vset.pattern.permute.xlu0 64
    %1205 = vperm.xlu0 %1204, %v1203
    %v1206 = vpop.permute.xlu0 %1205
    %vm1207 = vcmp.eq.s32.totalorder %v1206, 1
    %v1208 = vsel %vm1207, %v1198, %v430
    %v1209 = vsel %vm1207, %v1200, %v434
    %s1210 = scalar_lea.vmem [#allocation2], 4
    %v1211 = vld [vmem:[%s1210] ss:$8 sm:$0x3]
    %v1214 = vcombine.low %v1208, %v1209
    %v1216 = vunpack.c.l.s4 1966171168
    %v1217 = vunpack.c.0.s8 %v1216
    %v1218 = vlaneseq
    %v1219 = vshrl.u32 %v1218, 7
    %v1220 = vsub.s32 %v1217, %v1219
    %v1221 = vrot.slane %v1214, %v1220
    %v1223 = vunpack.c.l.s4 1966171168
    %v1224 = vunpack.c.0.s8 %v1223
    %v1225 = vlaneseq
    %v1226 = vshrl.u32 %v1225, 7
    %v1227 = vsub.s32 %v1224, %v1226
    %v1228 = vrot.slane %v1221, %v1227
    %v1230 = vadd.f32 %v1211, %v1228
    %v1233 = vcombine.low %v1115, %v1117
    %v1235 = vunpack.c.l.s4 1966171168
    %v1236 = vunpack.c.0.s8 %v1235
    %v1237 = vlaneseq
    %v1238 = vshrl.u32 %v1237, 7
    %v1239 = vsub.s32 %v1236, %v1238
    %v1240 = vrot.slane %v1233, %v1239
    %v1242 = vunpack.c.l.s4 1966171168
    %v1243 = vunpack.c.0.s8 %v1242
    %v1244 = vlaneseq
    %v1245 = vshrl.u32 %v1244, 7
    %v1246 = vsub.s32 %v1243, %v1245
    %v1247 = vrot.slane %v1240, %v1246
    %1248 = vrot.lane.b32.xlu0 %v1247, 120
    %v1249 = vpop.permute.xlu0 %1248
    %v1250 = vrot.slane %v1249, 1
    %v1251 = vsel %vm204, %v1249, %v1250
    %v1253 = vadd.f32 %v1230, %v1251
    %v1254 = vxor.u32 %v1253, 2147483648
    %v1255 = vmul.f32 %v1254, 1.442695
    %v1256 = vpow.pop %v1255
    %v1257 = vadd.f32 %v1256, 1.0
    %v1258 = vrcp.pop %v1257
    %v1259 = vmul.f32 1.0, %v1258
    %v1261 = vrot.slane %v1259, 1
    %v1263 = vmul.f32 %v1261, 2.0
    %v1264 = vsub.f32 %v1263, 1.0
    %v1265 = vmul.f32 %v1259, %v1264
    %1267 = vrot.lane.b32.xlu0 %v1018, 32
    %v1268 = vpop.permute.xlu0 %1267
    %v1270 = vmul.f32 %v1259, %v1268
    %1272 = vrot.lane.b32.xlu0 %v1270, 96
    %v1273 = vpop.permute.xlu0 %1272
    %v1275 = vadd.f32 %v1265, %v1273
    %v1276 = vtanh.pop %v1275
    %1278 = vrot.lane.b32.xlu0 %v1276, 64
    %v1279 = vpop.permute.xlu0 %1278
    %v1281 = vmul.f32 %v1259, %v1279
    %1283 = vrot.lane.b32.xlu0 %v1281, 32
    %v1284 = vpop.permute.xlu0 %1283
    %v1286 = vmul.f32 %v1259, %v1284
    %v1287 = vsub.f32 1.0, %v1259
    %1289 = vrot.lane.b32.xlu0 %v1230, 64
    %v1290 = vpop.permute.xlu0 %1289
    %v1291 = vrot.slane %v1290, 1
    %v1292 = vsel %vm181, %v1290, %v1291
    %v1294 = vmul.f32 %v1287, %v1292
    %v1295 = vadd.f32 %v1286, %v1294
    %v1297 = vlaneseq
    %v1298 = vshrl.u32 %v1297, 7
    %v1299 = vsub.s32 0, %v1298
    %v1300 = vrot.slane %v1295, %v1299
    %1301 = vrot.lane.b32.xlu0 %v1300, 32
    %v1302 = vpop.permute.xlu0 %1301
    %v1303 = vsel %vm105, %v1302, 0
    %1305 = vmatprep.subr.mxu0 0.0
    %1306 = vmatpush1.msra.mxu0 0.0
    %1307 = vmatprep.subr.mxu0 0.0
    %1308 = vmatpush1.msra.mxu0 0.0
    %1309 = vmatprep.subr.mxu0 0.0
    %1310 = vmatpush1.msra.mxu0 0.0
    %1311 = vmatprep.subr.mxu0 0.0
    %1312 = vmatpush1.msra.mxu0 0.0
    %1313 = vmatprep.subr.mxu0 0.0
    %1314 = vmatpush1.msra.mxu0 0.0
    %1315 = vmatprep.subr.mxu0 0.0
    %1316 = vmatpush1.msra.mxu0 0.0
    %1317 = vmatprep.subr.mxu0 0.0
    %1318 = vmatpush1.msra.mxu0 0.0
    %1319 = vmatprep.subr.mxu0 0.0
    %1320 = vmatpush1.msra.mxu0 0.0
    %1321 = vmatprep.subr.mxu0 0.0
    %1322 = vmatpush1.msra.mxu0 0.0
    %1323 = vmatprep.subr.mxu0 0.0
    %1324 = vmatpush1.msra.mxu0 0.0
    %1325 = vmatprep.subr.mxu0 0.0
    %1326 = vmatpush1.msra.mxu0 0.0
    %1327 = vmatprep.subr.mxu0 0.0
    %1328 = vmatpush1.msra.mxu0 0.0
    %1329 = vmatprep.subr.mxu0 %v190
    %1330 = vmatpush1.msra.mxu0 %v189
    %1331 = vmatprep.subr.mxu0 %v188
    %1332 = vmatpush1.msra.mxu0 %v187
    %1333 = vmatprep.subr.mxu0 %v186
    %1334 = vmatpush1.msra.mxu0 %v185
    %1335 = vmatprep.subr.mxu0 %v184
    %1336 = vmatpush1.msra.mxu0 %v183
    %1337 = vmatprep.subr.mxu0 0.0
    %1338 = vmatpush2.msra.mxu0 0.0
    %1339 = vmatprep.subr.mxu0 0.0
    %1340 = vmatpush2.msra.mxu0 0.0
    %1341 = vmatprep.subr.mxu0 0.0
    %1342 = vmatpush2.msra.mxu0 0.0
    %1343 = vmatprep.subr.mxu0 0.0
    %1344 = vmatpush2.msra.mxu0 0.0
    %1345 = vmatprep.subr.mxu0 0.0
    %1346 = vmatpush2.msra.mxu0 0.0
    %1347 = vmatprep.subr.mxu0 0.0
    %1348 = vmatpush2.msra.mxu0 0.0
    %1349 = vmatprep.subr.mxu0 0.0
    %1350 = vmatpush2.msra.mxu0 0.0
    %1351 = vmatprep.subr.mxu0 0.0
    %1352 = vmatpush2.msra.mxu0 0.0
    %1353 = vmatprep.subr.mxu0 0.0
    %1354 = vmatpush2.msra.mxu0 0.0
    %1355 = vmatprep.subr.mxu0 0.0
    %1356 = vmatpush2.msra.mxu0 0.0
    %1357 = vmatprep.subr.mxu0 0.0
    %1358 = vmatpush2.msra.mxu0 0.0
    %1359 = vmatprep.subr.mxu0 0.0
    %1360 = vmatpush2.msra.mxu0 0.0
    %1361 = vmatprep.subr.mxu0 0.0
    %1362 = vmatpush2.msra.mxu0 0.0
    %1363 = vmatprep.subr.mxu0 0.0
    %1364 = vmatpush2.msra.mxu0 0.0
    %1365 = vmatprep.subr.mxu0 0.0
    %1366 = vmatpush2.msra.mxu0 0.0
    %1367 = vmatprep.subr.mxu0 0.0
    %1368 = vmatpush2.msra.mxu0 0.0
    %1369 = vmatprep.mubr.f32.mxu0 0.0
    %1370 = vmatmul.mubr.f32.gmra.mxu0 %v1303
    %v1371 = vpop.f32.mrf.mxu0
    %v1372 = vadd.f32 %v256, %v1371
    %v1373 = vpop.f32.mrf.mxu0
    %v1374 = vadd.f32 %v260, %v1373
    %1375 = vdwg.mxu0
    %vm1376 = vcmp.gt.f32.partialorder %v1372, 0.0
    %v1377 = vsel %vm1376, 1, 0
    %v1378 = vcvt.s32.f32 %v1377
    %vm1379 = vcmp.eq.s32.totalorder %v197, 4
    %v1380 = vlaneseq
    %v1381 = vshrl.u32 %v1380, 7
    %v1382 = vsub.s32 0, %v1381
    %v1383 = vrot.slane %v1372, %v1382
    %v1384 = vsel %vm1379, %v1383, %v1127
    %v1386 = vsel %vm345, %v1378, 0
    %1388 = vmatprep.subr.mxu0 0.0
    %1389 = vmatpush1.msra.mxu0 0.0
    %1390 = vmatprep.subr.mxu0 0.0
    %1391 = vmatpush1.msra.mxu0 0.0
    %1392 = vmatprep.subr.mxu0 0.0
    %1393 = vmatpush1.msra.mxu0 0.0
    %1394 = vmatprep.subr.mxu0 0.0
    %1395 = vmatpush1.msra.mxu0 0.0
    %1396 = vmatprep.subr.mxu0 0.0
    %1397 = vmatpush1.msra.mxu0 0.0
    %1398 = vmatprep.subr.mxu0 0.0
    %1399 = vmatpush1.msra.mxu0 0.0
    %1400 = vmatprep.subr.mxu0 0.0
    %1401 = vmatpush1.msra.mxu0 0.0
    %1402 = vmatprep.subr.mxu0 0.0
    %1403 = vmatpush1.msra.mxu0 0.0
    %1404 = vmatprep.subr.mxu0 0.0
    %1405 = vmatpush1.msra.mxu0 0.0
    %1406 = vmatprep.subr.mxu0 0.0
    %1407 = vmatpush1.msra.mxu0 0.0
    %1408 = vmatprep.subr.mxu0 0.0
    %1409 = vmatpush1.msra.mxu0 0.0
    %1410 = vmatprep.subr.mxu0 0.0
    %1411 = vmatpush1.msra.mxu0 0.0
    %1412 = vmatprep.subr.mxu0 0.0
    %1413 = vmatpush1.msra.mxu0 0.0
    %1414 = vmatprep.subr.mxu0 0.0
    %1415 = vmatpush1.msra.mxu0 0.0
    %1416 = vmatprep.subr.mxu0 0.0
    %1417 = vmatpush1.msra.mxu0 0.0
    %1418 = vmatprep.subr.mxu0 %v193
    %1419 = vmatpush1.msra.mxu0 %v192
    %1420 = vmatprep.subr.mxu0 0.0
    %1421 = vmatpush2.msra.mxu0 0.0
    %1422 = vmatprep.subr.mxu0 0.0
    %1423 = vmatpush2.msra.mxu0 0.0
    %1424 = vmatprep.subr.mxu0 0.0
    %1425 = vmatpush2.msra.mxu0 0.0
    %1426 = vmatprep.subr.mxu0 0.0
    %1427 = vmatpush2.msra.mxu0 0.0
    %1428 = vmatprep.subr.mxu0 0.0
    %1429 = vmatpush2.msra.mxu0 0.0
    %1430 = vmatprep.subr.mxu0 0.0
    %1431 = vmatpush2.msra.mxu0 0.0
    %1432 = vmatprep.subr.mxu0 0.0
    %1433 = vmatpush2.msra.mxu0 0.0
    %1434 = vmatprep.subr.mxu0 0.0
    %1435 = vmatpush2.msra.mxu0 0.0
    %1436 = vmatprep.subr.mxu0 0.0
    %1437 = vmatpush2.msra.mxu0 0.0
    %1438 = vmatprep.subr.mxu0 0.0
    %1439 = vmatpush2.msra.mxu0 0.0
    %1440 = vmatprep.subr.mxu0 0.0
    %1441 = vmatpush2.msra.mxu0 0.0
    %1442 = vmatprep.subr.mxu0 0.0
    %1443 = vmatpush2.msra.mxu0 0.0
    %1444 = vmatprep.subr.mxu0 0.0
    %1445 = vmatpush2.msra.mxu0 0.0
    %1446 = vmatprep.subr.mxu0 0.0
    %1447 = vmatpush2.msra.mxu0 0.0
    %1448 = vmatprep.subr.mxu0 0.0
    %1449 = vmatpush2.msra.mxu0 0.0
    %1450 = vmatprep.subr.mxu0 0.0
    %1451 = vmatpush2.msra.mxu0 0.0
    %1452 = vmatprep.mubr.f32.mxu0 0.0
    %1453 = vmatmul.mubr.f32.gmra.mxu0 %v1386
    %v1454 = vpop.f32.mrf.mxu0
    %v1455 = vadd.f32 0.0, %v1454
    %v1456 = vpop.f32.mrf.mxu0
    %v1457 = vadd.f32 0.0, %v1456
    %1458 = vdwg.mxu0
    %vm1459 = vcmp.gt.f32.partialorder %v1457, 0.0
    %v1460 = vsel %vm1459, 1, 0
    %1461 = vset.pattern.permute.xlu0 64
    %1462 = vperm.xlu0 %1461, %v1460
    %v1463 = vpop.permute.xlu0 %1462
    %vm1464 = vcmp.eq.s32.totalorder %v1463, 1
    %v1465 = vsel %vm1464, %v1455, %v430
    %v1466 = vsel %vm1464, %v1457, %v434
    %s1467 = scalar_lea.vmem [#allocation2], 5
    %v1468 = vld [vmem:[%s1467] ss:$8 sm:$0x3]
    %v1471 = vcombine.low %v1465, %v1466
    %v1473 = vunpack.c.l.s4 1966171168
    %v1474 = vunpack.c.0.s8 %v1473
    %v1475 = vlaneseq
    %v1476 = vshrl.u32 %v1475, 7
    %v1477 = vsub.s32 %v1474, %v1476
    %v1478 = vrot.slane %v1471, %v1477
    %v1480 = vunpack.c.l.s4 1966171168
    %v1481 = vunpack.c.0.s8 %v1480
    %v1482 = vlaneseq
    %v1483 = vshrl.u32 %v1482, 7
    %v1484 = vsub.s32 %v1481, %v1483
    %v1485 = vrot.slane %v1478, %v1484
    %v1487 = vadd.f32 %v1468, %v1485
    %v1490 = vcombine.low %v1372, %v1374
    %v1492 = vunpack.c.l.s4 1966171168
    %v1493 = vunpack.c.0.s8 %v1492
    %v1494 = vlaneseq
    %v1495 = vshrl.u32 %v1494, 7
    %v1496 = vsub.s32 %v1493, %v1495
    %v1497 = vrot.slane %v1490, %v1496
    %v1499 = vunpack.c.l.s4 1966171168
    %v1500 = vunpack.c.0.s8 %v1499
    %v1501 = vlaneseq
    %v1502 = vshrl.u32 %v1501, 7
    %v1503 = vsub.s32 %v1500, %v1502
    %v1504 = vrot.slane %v1497, %v1503
    %1505 = vrot.lane.b32.xlu0 %v1504, 120
    %v1506 = vpop.permute.xlu0 %1505
    %v1507 = vrot.slane %v1506, 1
    %v1508 = vsel %vm204, %v1506, %v1507
    %v1510 = vadd.f32 %v1487, %v1508
    %v1511 = vxor.u32 %v1510, 2147483648
    %v1512 = vmul.f32 %v1511, 1.442695
    %v1513 = vpow.pop %v1512
    %v1514 = vadd.f32 %v1513, 1.0
    %v1515 = vrcp.pop %v1514
    %v1516 = vmul.f32 1.0, %v1515
    %v1518 = vrot.slane %v1516, 1
    %v1520 = vmul.f32 %v1518, 2.0
    %v1521 = vsub.f32 %v1520, 1.0
    %v1522 = vmul.f32 %v1516, %v1521
    %1524 = vrot.lane.b32.xlu0 %v1275, 32
    %v1525 = vpop.permute.xlu0 %1524
    %v1527 = vmul.f32 %v1516, %v1525
    %1529 = vrot.lane.b32.xlu0 %v1527, 96
    %v1530 = vpop.permute.xlu0 %1529
    %v1532 = vadd.f32 %v1522, %v1530
    %v1533 = vtanh.pop %v1532
    %1535 = vrot.lane.b32.xlu0 %v1533, 64
    %v1536 = vpop.permute.xlu0 %1535
    %v1538 = vmul.f32 %v1516, %v1536
    %1540 = vrot.lane.b32.xlu0 %v1538, 32
    %v1541 = vpop.permute.xlu0 %1540
    %v1543 = vmul.f32 %v1516, %v1541
    %v1544 = vsub.f32 1.0, %v1516
    %1546 = vrot.lane.b32.xlu0 %v1487, 64
    %v1547 = vpop.permute.xlu0 %1546
    %v1548 = vrot.slane %v1547, 1
    %v1549 = vsel %vm181, %v1547, %v1548
    %v1551 = vmul.f32 %v1544, %v1549
    %v1552 = vadd.f32 %v1543, %v1551
    %v1554 = vlaneseq
    %v1555 = vshrl.u32 %v1554, 7
    %v1556 = vsub.s32 0, %v1555
    %v1557 = vrot.slane %v1552, %v1556
    %1558 = vrot.lane.b32.xlu0 %v1557, 32
    %v1559 = vpop.permute.xlu0 %1558
    %v1560 = vsel %vm105, %v1559, 0
    %1562 = vmatprep.subr.mxu0 0.0
    %1563 = vmatpush1.msra.mxu0 0.0
    %1564 = vmatprep.subr.mxu0 0.0
    %1565 = vmatpush1.msra.mxu0 0.0
    %1566 = vmatprep.subr.mxu0 0.0
    %1567 = vmatpush1.msra.mxu0 0.0
    %1568 = vmatprep.subr.mxu0 0.0
    %1569 = vmatpush1.msra.mxu0 0.0
    %1570 = vmatprep.subr.mxu0 0.0
    %1571 = vmatpush1.msra.mxu0 0.0
    %1572 = vmatprep.subr.mxu0 0.0
    %1573 = vmatpush1.msra.mxu0 0.0
    %1574 = vmatprep.subr.mxu0 0.0
    %1575 = vmatpush1.msra.mxu0 0.0
    %1576 = vmatprep.subr.mxu0 0.0
    %1577 = vmatpush1.msra.mxu0 0.0
    %1578 = vmatprep.subr.mxu0 0.0
    %1579 = vmatpush1.msra.mxu0 0.0
    %1580 = vmatprep.subr.mxu0 0.0
    %1581 = vmatpush1.msra.mxu0 0.0
    %1582 = vmatprep.subr.mxu0 0.0
    %1583 = vmatpush1.msra.mxu0 0.0
    %1584 = vmatprep.subr.mxu0 0.0
    %1585 = vmatpush1.msra.mxu0 0.0
    %1586 = vmatprep.subr.mxu0 %v190
    %1587 = vmatpush1.msra.mxu0 %v189
    %1588 = vmatprep.subr.mxu0 %v188
    %1589 = vmatpush1.msra.mxu0 %v187
    %1590 = vmatprep.subr.mxu0 %v186
    %1591 = vmatpush1.msra.mxu0 %v185
    %1592 = vmatprep.subr.mxu0 %v184
    %1593 = vmatpush1.msra.mxu0 %v183
    %1594 = vmatprep.subr.mxu0 0.0
    %1595 = vmatpush2.msra.mxu0 0.0
    %1596 = vmatprep.subr.mxu0 0.0
    %1597 = vmatpush2.msra.mxu0 0.0
    %1598 = vmatprep.subr.mxu0 0.0
    %1599 = vmatpush2.msra.mxu0 0.0
    %1600 = vmatprep.subr.mxu0 0.0
    %1601 = vmatpush2.msra.mxu0 0.0
    %1602 = vmatprep.subr.mxu0 0.0
    %1603 = vmatpush2.msra.mxu0 0.0
    %1604 = vmatprep.subr.mxu0 0.0
    %1605 = vmatpush2.msra.mxu0 0.0
    %1606 = vmatprep.subr.mxu0 0.0
    %1607 = vmatpush2.msra.mxu0 0.0
    %1608 = vmatprep.subr.mxu0 0.0
    %1609 = vmatpush2.msra.mxu0 0.0
    %1610 = vmatprep.subr.mxu0 0.0
    %1611 = vmatpush2.msra.mxu0 0.0
    %1612 = vmatprep.subr.mxu0 0.0
    %1613 = vmatpush2.msra.mxu0 0.0
    %1614 = vmatprep.subr.mxu0 0.0
    %1615 = vmatpush2.msra.mxu0 0.0
    %1616 = vmatprep.subr.mxu0 0.0
    %1617 = vmatpush2.msra.mxu0 0.0
    %1618 = vmatprep.subr.mxu0 0.0
    %1619 = vmatpush2.msra.mxu0 0.0
    %1620 = vmatprep.subr.mxu0 0.0
    %1621 = vmatpush2.msra.mxu0 0.0
    %1622 = vmatprep.subr.mxu0 0.0
    %1623 = vmatpush2.msra.mxu0 0.0
    %1624 = vmatprep.subr.mxu0 0.0
    %1625 = vmatpush2.msra.mxu0 0.0
    %1626 = vmatprep.mubr.f32.mxu0 0.0
    %1627 = vmatmul.mubr.f32.gmra.mxu0 %v1560
    %v1628 = vpop.f32.mrf.mxu0
    %v1629 = vadd.f32 %v256, %v1628
    %v1630 = vpop.f32.mrf.mxu0
    %v1631 = vadd.f32 %v260, %v1630
    %1632 = vdwg.mxu0
    %vm1633 = vcmp.gt.f32.partialorder %v1629, 0.0
    %v1634 = vsel %vm1633, 1, 0
    %v1635 = vcvt.s32.f32 %v1634
    %vm1636 = vcmp.eq.s32.totalorder %v197, 5
    %v1637 = vlaneseq
    %v1638 = vshrl.u32 %v1637, 7
    %v1639 = vsub.s32 0, %v1638
    %v1640 = vrot.slane %v1629, %v1639
    %v1641 = vsel %vm1636, %v1640, %v1384
    %v1643 = vsel %vm345, %v1635, 0
    %1645 = vmatprep.subr.mxu0 0.0
    %1646 = vmatpush1.msra.mxu0 0.0
    %1647 = vmatprep.subr.mxu0 0.0
    %1648 = vmatpush1.msra.mxu0 0.0
    %1649 = vmatprep.subr.mxu0 0.0
    %1650 = vmatpush1.msra.mxu0 0.0
    %1651 = vmatprep.subr.mxu0 0.0
    %1652 = vmatpush1.msra.mxu0 0.0
    %1653 = vmatprep.subr.mxu0 0.0
    %1654 = vmatpush1.msra.mxu0 0.0
    %1655 = vmatprep.subr.mxu0 0.0
    %1656 = vmatpush1.msra.mxu0 0.0
    %1657 = vmatprep.subr.mxu0 0.0
    %1658 = vmatpush1.msra.mxu0 0.0
    %1659 = vmatprep.subr.mxu0 0.0
    %1660 = vmatpush1.msra.mxu0 0.0
    %1661 = vmatprep.subr.mxu0 0.0
    %1662 = vmatpush1.msra.mxu0 0.0
    %1663 = vmatprep.subr.mxu0 0.0
    %1664 = vmatpush1.msra.mxu0 0.0
    %1665 = vmatprep.subr.mxu0 0.0
    %1666 = vmatpush1.msra.mxu0 0.0
    %1667 = vmatprep.subr.mxu0 0.0
    %1668 = vmatpush1.msra.mxu0 0.0
    %1669 = vmatprep.subr.mxu0 0.0
    %1670 = vmatpush1.msra.mxu0 0.0
    %1671 = vmatprep.subr.mxu0 0.0
    %1672 = vmatpush1.msra.mxu0 0.0
    %1673 = vmatprep.subr.mxu0 0.0
    %1674 = vmatpush1.msra.mxu0 0.0
    %1675 = vmatprep.subr.mxu0 %v193
    %1676 = vmatpush1.msra.mxu0 %v192
    %1677 = vmatprep.subr.mxu0 0.0
    %1678 = vmatpush2.msra.mxu0 0.0
    %1679 = vmatprep.subr.mxu0 0.0
    %1680 = vmatpush2.msra.mxu0 0.0
    %1681 = vmatprep.subr.mxu0 0.0
    %1682 = vmatpush2.msra.mxu0 0.0
    %1683 = vmatprep.subr.mxu0 0.0
    %1684 = vmatpush2.msra.mxu0 0.0
    %1685 = vmatprep.subr.mxu0 0.0
    %1686 = vmatpush2.msra.mxu0 0.0
    %1687 = vmatprep.subr.mxu0 0.0
    %1688 = vmatpush2.msra.mxu0 0.0
    %1689 = vmatprep.subr.mxu0 0.0
    %1690 = vmatpush2.msra.mxu0 0.0
    %1691 = vmatprep.subr.mxu0 0.0
    %1692 = vmatpush2.msra.mxu0 0.0
    %1693 = vmatprep.subr.mxu0 0.0
    %1694 = vmatpush2.msra.mxu0 0.0
    %1695 = vmatprep.subr.mxu0 0.0
    %1696 = vmatpush2.msra.mxu0 0.0
    %1697 = vmatprep.subr.mxu0 0.0
    %1698 = vmatpush2.msra.mxu0 0.0
    %1699 = vmatprep.subr.mxu0 0.0
    %1700 = vmatpush2.msra.mxu0 0.0
    %1701 = vmatprep.subr.mxu0 0.0
    %1702 = vmatpush2.msra.mxu0 0.0
    %1703 = vmatprep.subr.mxu0 0.0
    %1704 = vmatpush2.msra.mxu0 0.0
    %1705 = vmatprep.subr.mxu0 0.0
    %1706 = vmatpush2.msra.mxu0 0.0
    %1707 = vmatprep.subr.mxu0 0.0
    %1708 = vmatpush2.msra.mxu0 0.0
    %1709 = vmatprep.mubr.f32.mxu0 0.0
    %1710 = vmatmul.mubr.f32.gmra.mxu0 %v1643
    %v1711 = vpop.f32.mrf.mxu0
    %v1712 = vadd.f32 0.0, %v1711
    %v1713 = vpop.f32.mrf.mxu0
    %v1714 = vadd.f32 0.0, %v1713
    %1715 = vdwg.mxu0
    %vm1716 = vcmp.gt.f32.partialorder %v1714, 0.0
    %v1717 = vsel %vm1716, 1, 0
    %1718 = vset.pattern.permute.xlu0 64
    %1719 = vperm.xlu0 %1718, %v1717
    %v1720 = vpop.permute.xlu0 %1719
    %vm1721 = vcmp.eq.s32.totalorder %v1720, 1
    %v1722 = vsel %vm1721, %v1712, %v430
    %v1723 = vsel %vm1721, %v1714, %v434
    %s1724 = scalar_lea.vmem [#allocation2], 6
    %v1725 = vld [vmem:[%s1724] ss:$8 sm:$0x3]
    %v1728 = vcombine.low %v1722, %v1723
    %v1730 = vunpack.c.l.s4 1966171168
    %v1731 = vunpack.c.0.s8 %v1730
    %v1732 = vlaneseq
    %v1733 = vshrl.u32 %v1732, 7
    %v1734 = vsub.s32 %v1731, %v1733
    %v1735 = vrot.slane %v1728, %v1734
    %v1737 = vunpack.c.l.s4 1966171168
    %v1738 = vunpack.c.0.s8 %v1737
    %v1739 = vlaneseq
    %v1740 = vshrl.u32 %v1739, 7
    %v1741 = vsub.s32 %v1738, %v1740
    %v1742 = vrot.slane %v1735, %v1741
    %v1744 = vadd.f32 %v1725, %v1742
    %v1747 = vcombine.low %v1629, %v1631
    %v1749 = vunpack.c.l.s4 1966171168
    %v1750 = vunpack.c.0.s8 %v1749
    %v1751 = vlaneseq
    %v1752 = vshrl.u32 %v1751, 7
    %v1753 = vsub.s32 %v1750, %v1752
    %v1754 = vrot.slane %v1747, %v1753
    %v1756 = vunpack.c.l.s4 1966171168
    %v1757 = vunpack.c.0.s8 %v1756
    %v1758 = vlaneseq
    %v1759 = vshrl.u32 %v1758, 7
    %v1760 = vsub.s32 %v1757, %v1759
    %v1761 = vrot.slane %v1754, %v1760
    %1762 = vrot.lane.b32.xlu0 %v1761, 120
    %v1763 = vpop.permute.xlu0 %1762
    %v1764 = vrot.slane %v1763, 1
    %v1765 = vsel %vm204, %v1763, %v1764
    %v1767 = vadd.f32 %v1744, %v1765
    %v1768 = vxor.u32 %v1767, 2147483648
    %v1769 = vmul.f32 %v1768, 1.442695
    %v1770 = vpow.pop %v1769
    %v1771 = vadd.f32 %v1770, 1.0
    %v1772 = vrcp.pop %v1771
    %v1773 = vmul.f32 1.0, %v1772
    %v1775 = vrot.slane %v1773, 1
    %v1777 = vmul.f32 %v1775, 2.0
    %v1778 = vsub.f32 %v1777, 1.0
    %v1779 = vmul.f32 %v1773, %v1778
    %1781 = vrot.lane.b32.xlu0 %v1532, 32
    %v1782 = vpop.permute.xlu0 %1781
    %v1784 = vmul.f32 %v1773, %v1782
    %1786 = vrot.lane.b32.xlu0 %v1784, 96
    %v1787 = vpop.permute.xlu0 %1786
    %v1789 = vadd.f32 %v1779, %v1787
    %v1790 = vtanh.pop %v1789
    %1792 = vrot.lane.b32.xlu0 %v1790, 64
    %v1793 = vpop.permute.xlu0 %1792
    %v1795 = vmul.f32 %v1773, %v1793
    %1797 = vrot.lane.b32.xlu0 %v1795, 32
    %v1798 = vpop.permute.xlu0 %1797
    %v1800 = vmul.f32 %v1773, %v1798
    %v1801 = vsub.f32 1.0, %v1773
    %1803 = vrot.lane.b32.xlu0 %v1744, 64
    %v1804 = vpop.permute.xlu0 %1803
    %v1805 = vrot.slane %v1804, 1
    %v1806 = vsel %vm181, %v1804, %v1805
    %v1808 = vmul.f32 %v1801, %v1806
    %v1809 = vadd.f32 %v1800, %v1808
    %v1811 = vlaneseq
    %v1812 = vshrl.u32 %v1811, 7
    %v1813 = vsub.s32 0, %v1812
    %v1814 = vrot.slane %v1809, %v1813
    %1815 = vrot.lane.b32.xlu0 %v1814, 32
    %v1816 = vpop.permute.xlu0 %1815
    %v1817 = vsel %vm105, %v1816, 0
    %1819 = vmatprep.subr.mxu0 0.0
    %1820 = vmatpush1.msra.mxu0 0.0
    %1821 = vmatprep.subr.mxu0 0.0
    %1822 = vmatpush1.msra.mxu0 0.0
    %1823 = vmatprep.subr.mxu0 0.0
    %1824 = vmatpush1.msra.mxu0 0.0
    %1825 = vmatprep.subr.mxu0 0.0
    %1826 = vmatpush1.msra.mxu0 0.0
    %1827 = vmatprep.subr.mxu0 0.0
    %1828 = vmatpush1.msra.mxu0 0.0
    %1829 = vmatprep.subr.mxu0 0.0
    %1830 = vmatpush1.msra.mxu0 0.0
    %1831 = vmatprep.subr.mxu0 0.0
    %1832 = vmatpush1.msra.mxu0 0.0
    %1833 = vmatprep.subr.mxu0 0.0
    %1834 = vmatpush1.msra.mxu0 0.0
    %1835 = vmatprep.subr.mxu0 0.0
    %1836 = vmatpush1.msra.mxu0 0.0
    %1837 = vmatprep.subr.mxu0 0.0
    %1838 = vmatpush1.msra.mxu0 0.0
    %1839 = vmatprep.subr.mxu0 0.0
    %1840 = vmatpush1.msra.mxu0 0.0
    %1841 = vmatprep.subr.mxu0 0.0
    %1842 = vmatpush1.msra.mxu0 0.0
    %1843 = vmatprep.subr.mxu0 %v190
    %1844 = vmatpush1.msra.mxu0 %v189
    %1845 = vmatprep.subr.mxu0 %v188
    %1846 = vmatpush1.msra.mxu0 %v187
    %1847 = vmatprep.subr.mxu0 %v186
    %1848 = vmatpush1.msra.mxu0 %v185
    %1849 = vmatprep.subr.mxu0 %v184
    %1850 = vmatpush1.msra.mxu0 %v183
    %1851 = vmatprep.subr.mxu0 0.0
    %1852 = vmatpush2.msra.mxu0 0.0
    %1853 = vmatprep.subr.mxu0 0.0
    %1854 = vmatpush2.msra.mxu0 0.0
    %1855 = vmatprep.subr.mxu0 0.0
    %1856 = vmatpush2.msra.mxu0 0.0
    %1857 = vmatprep.subr.mxu0 0.0
    %1858 = vmatpush2.msra.mxu0 0.0
    %1859 = vmatprep.subr.mxu0 0.0
    %1860 = vmatpush2.msra.mxu0 0.0
    %1861 = vmatprep.subr.mxu0 0.0
    %1862 = vmatpush2.msra.mxu0 0.0
    %1863 = vmatprep.subr.mxu0 0.0
    %1864 = vmatpush2.msra.mxu0 0.0
    %1865 = vmatprep.subr.mxu0 0.0
    %1866 = vmatpush2.msra.mxu0 0.0
    %1867 = vmatprep.subr.mxu0 0.0
    %1868 = vmatpush2.msra.mxu0 0.0
    %1869 = vmatprep.subr.mxu0 0.0
    %1870 = vmatpush2.msra.mxu0 0.0
    %1871 = vmatprep.subr.mxu0 0.0
    %1872 = vmatpush2.msra.mxu0 0.0
    %1873 = vmatprep.subr.mxu0 0.0
    %1874 = vmatpush2.msra.mxu0 0.0
    %1875 = vmatprep.subr.mxu0 0.0
    %1876 = vmatpush2.msra.mxu0 0.0
    %1877 = vmatprep.subr.mxu0 0.0
    %1878 = vmatpush2.msra.mxu0 0.0
    %1879 = vmatprep.subr.mxu0 0.0
    %1880 = vmatpush2.msra.mxu0 0.0
    %1881 = vmatprep.subr.mxu0 0.0
    %1882 = vmatpush2.msra.mxu0 0.0
    %1883 = vmatprep.mubr.f32.mxu0 0.0
    %1884 = vmatmul.mubr.f32.gmra.mxu0 %v1817
    %v1885 = vpop.f32.mrf.mxu0
    %v1886 = vadd.f32 %v256, %v1885
    %v1887 = vpop.f32.mrf.mxu0
    %v1888 = vadd.f32 %v260, %v1887
    %1889 = vdwg.mxu0
    %vm1890 = vcmp.gt.f32.partialorder %v1886, 0.0
    %v1891 = vsel %vm1890, 1, 0
    %v1892 = vcvt.s32.f32 %v1891
    %vm1893 = vcmp.eq.s32.totalorder %v197, 6
    %v1894 = vlaneseq
    %v1895 = vshrl.u32 %v1894, 7
    %v1896 = vsub.s32 0, %v1895
    %v1897 = vrot.slane %v1886, %v1896
    %v1898 = vsel %vm1893, %v1897, %v1641
    %v1900 = vsel %vm345, %v1892, 0
    %1902 = vmatprep.subr.mxu0 0.0
    %1903 = vmatpush1.msra.mxu0 0.0
    %1904 = vmatprep.subr.mxu0 0.0
    %1905 = vmatpush1.msra.mxu0 0.0
    %1906 = vmatprep.subr.mxu0 0.0
    %1907 = vmatpush1.msra.mxu0 0.0
    %1908 = vmatprep.subr.mxu0 0.0
    %1909 = vmatpush1.msra.mxu0 0.0
    %1910 = vmatprep.subr.mxu0 0.0
    %1911 = vmatpush1.msra.mxu0 0.0
    %1912 = vmatprep.subr.mxu0 0.0
    %1913 = vmatpush1.msra.mxu0 0.0
    %1914 = vmatprep.subr.mxu0 0.0
    %1915 = vmatpush1.msra.mxu0 0.0
    %1916 = vmatprep.subr.mxu0 0.0
    %1917 = vmatpush1.msra.mxu0 0.0
    %1918 = vmatprep.subr.mxu0 0.0
    %1919 = vmatpush1.msra.mxu0 0.0
    %1920 = vmatprep.subr.mxu0 0.0
    %1921 = vmatpush1.msra.mxu0 0.0
    %1922 = vmatprep.subr.mxu0 0.0
    %1923 = vmatpush1.msra.mxu0 0.0
    %1924 = vmatprep.subr.mxu0 0.0
    %1925 = vmatpush1.msra.mxu0 0.0
    %1926 = vmatprep.subr.mxu0 0.0
    %1927 = vmatpush1.msra.mxu0 0.0
    %1928 = vmatprep.subr.mxu0 0.0
    %1929 = vmatpush1.msra.mxu0 0.0
    %1930 = vmatprep.subr.mxu0 0.0
    %1931 = vmatpush1.msra.mxu0 0.0
    %1932 = vmatprep.subr.mxu0 %v193
    %1933 = vmatpush1.msra.mxu0 %v192
    %1934 = vmatprep.subr.mxu0 0.0
    %1935 = vmatpush2.msra.mxu0 0.0
    %1936 = vmatprep.subr.mxu0 0.0
    %1937 = vmatpush2.msra.mxu0 0.0
    %1938 = vmatprep.subr.mxu0 0.0
    %1939 = vmatpush2.msra.mxu0 0.0
    %1940 = vmatprep.subr.mxu0 0.0
    %1941 = vmatpush2.msra.mxu0 0.0
    %1942 = vmatprep.subr.mxu0 0.0
    %1943 = vmatpush2.msra.mxu0 0.0
    %1944 = vmatprep.subr.mxu0 0.0
    %1945 = vmatpush2.msra.mxu0 0.0
    %1946 = vmatprep.subr.mxu0 0.0
    %1947 = vmatpush2.msra.mxu0 0.0
    %1948 = vmatprep.subr.mxu0 0.0
    %1949 = vmatpush2.msra.mxu0 0.0
    %1950 = vmatprep.subr.mxu0 0.0
    %1951 = vmatpush2.msra.mxu0 0.0
    %1952 = vmatprep.subr.mxu0 0.0
    %1953 = vmatpush2.msra.mxu0 0.0
    %1954 = vmatprep.subr.mxu0 0.0
    %1955 = vmatpush2.msra.mxu0 0.0
    %1956 = vmatprep.subr.mxu0 0.0
    %1957 = vmatpush2.msra.mxu0 0.0
    %1958 = vmatprep.subr.mxu0 0.0
    %1959 = vmatpush2.msra.mxu0 0.0
    %1960 = vmatprep.subr.mxu0 0.0
    %1961 = vmatpush2.msra.mxu0 0.0
    %1962 = vmatprep.subr.mxu0 0.0
    %1963 = vmatpush2.msra.mxu0 0.0
    %1964 = vmatprep.subr.mxu0 0.0
    %1965 = vmatpush2.msra.mxu0 0.0
    %1966 = vmatprep.mubr.f32.mxu0 0.0
    %1967 = vmatmul.mubr.f32.gmra.mxu0 %v1900
    %v1968 = vpop.f32.mrf.mxu0
    %v1969 = vadd.f32 0.0, %v1968
    %v1970 = vpop.f32.mrf.mxu0
    %v1971 = vadd.f32 0.0, %v1970
    %1972 = vdwg.mxu0
    %vm1973 = vcmp.gt.f32.partialorder %v1971, 0.0
    %v1974 = vsel %vm1973, 1, 0
    %1975 = vset.pattern.permute.xlu0 64
    %1976 = vperm.xlu0 %1975, %v1974
    %v1977 = vpop.permute.xlu0 %1976
    %vm1978 = vcmp.eq.s32.totalorder %v1977, 1
    %v1979 = vsel %vm1978, %v1969, %v430
    %v1980 = vsel %vm1978, %v1971, %v434
    %s1981 = scalar_lea.vmem [#allocation2], 7
    %v1982 = vld [vmem:[%s1981] ss:$8 sm:$0x3]
    %v1985 = vcombine.low %v1979, %v1980
    %v1987 = vunpack.c.l.s4 1966171168
    %v1988 = vunpack.c.0.s8 %v1987
    %v1989 = vlaneseq
    %v1990 = vshrl.u32 %v1989, 7
    %v1991 = vsub.s32 %v1988, %v1990
    %v1992 = vrot.slane %v1985, %v1991
    %v1994 = vunpack.c.l.s4 1966171168
    %v1995 = vunpack.c.0.s8 %v1994
    %v1996 = vlaneseq
    %v1997 = vshrl.u32 %v1996, 7
    %v1998 = vsub.s32 %v1995, %v1997
    %v1999 = vrot.slane %v1992, %v1998
    %v2001 = vadd.f32 %v1982, %v1999
    %v2004 = vcombine.low %v1886, %v1888
    %v2006 = vunpack.c.l.s4 1966171168
    %v2007 = vunpack.c.0.s8 %v2006
    %v2008 = vlaneseq
    %v2009 = vshrl.u32 %v2008, 7
    %v2010 = vsub.s32 %v2007, %v2009
    %v2011 = vrot.slane %v2004, %v2010
    %v2013 = vunpack.c.l.s4 1966171168
    %v2014 = vunpack.c.0.s8 %v2013
    %v2015 = vlaneseq
    %v2016 = vshrl.u32 %v2015, 7
    %v2017 = vsub.s32 %v2014, %v2016
    %v2018 = vrot.slane %v2011, %v2017
    %2019 = vrot.lane.b32.xlu0 %v2018, 120
    %v2020 = vpop.permute.xlu0 %2019
    %v2021 = vrot.slane %v2020, 1
    %v2022 = vsel %vm204, %v2020, %v2021
    %v2024 = vadd.f32 %v2001, %v2022
    %v2025 = vxor.u32 %v2024, 2147483648
    %v2026 = vmul.f32 %v2025, 1.442695
    %v2027 = vpow.pop %v2026
    %v2028 = vadd.f32 %v2027, 1.0
    %v2029 = vrcp.pop %v2028
    %v2030 = vmul.f32 1.0, %v2029
    %v2032 = vrot.slane %v2030, 1
    %v2034 = vmul.f32 %v2032, 2.0
    %v2035 = vsub.f32 %v2034, 1.0
    %v2036 = vmul.f32 %v2030, %v2035
    %2038 = vrot.lane.b32.xlu0 %v1789, 32
    %v2039 = vpop.permute.xlu0 %2038
    %v2041 = vmul.f32 %v2030, %v2039
    %2043 = vrot.lane.b32.xlu0 %v2041, 96
    %v2044 = vpop.permute.xlu0 %2043
    %v2046 = vadd.f32 %v2036, %v2044
    %v2047 = vtanh.pop %v2046
    %2049 = vrot.lane.b32.xlu0 %v2047, 64
    %v2050 = vpop.permute.xlu0 %2049
    %v2052 = vmul.f32 %v2030, %v2050
    %2054 = vrot.lane.b32.xlu0 %v2052, 32
    %v2055 = vpop.permute.xlu0 %2054
    %v2057 = vmul.f32 %v2030, %v2055
    %v2058 = vsub.f32 1.0, %v2030
    %2060 = vrot.lane.b32.xlu0 %v2001, 64
    %v2061 = vpop.permute.xlu0 %2060
    %v2062 = vrot.slane %v2061, 1
    %v2063 = vsel %vm181, %v2061, %v2062
    %v2065 = vmul.f32 %v2058, %v2063
    %v2066 = vadd.f32 %v2057, %v2065
    %v2068 = vlaneseq
    %v2069 = vshrl.u32 %v2068, 7
    %v2070 = vsub.s32 0, %v2069
    %v2071 = vrot.slane %v2066, %v2070
    %2072 = vrot.lane.b32.xlu0 %v2071, 32
    %v2073 = vpop.permute.xlu0 %2072
    %v2074 = vsel %vm105, %v2073, 0
    %2076 = vmatprep.subr.mxu0 0.0
    %2077 = vmatpush1.msra.mxu0 0.0
    %2078 = vmatprep.subr.mxu0 0.0
    %2079 = vmatpush1.msra.mxu0 0.0
    %2080 = vmatprep.subr.mxu0 0.0
    %2081 = vmatpush1.msra.mxu0 0.0
    %2082 = vmatprep.subr.mxu0 0.0
    %2083 = vmatpush1.msra.mxu0 0.0
    %2084 = vmatprep.subr.mxu0 0.0
    %2085 = vmatpush1.msra.mxu0 0.0
    %2086 = vmatprep.subr.mxu0 0.0
    %2087 = vmatpush1.msra.mxu0 0.0
    %2088 = vmatprep.subr.mxu0 0.0
    %2089 = vmatpush1.msra.mxu0 0.0
    %2090 = vmatprep.subr.mxu0 0.0
    %2091 = vmatpush1.msra.mxu0 0.0
    %2092 = vmatprep.subr.mxu0 0.0
    %2093 = vmatpush1.msra.mxu0 0.0
    %2094 = vmatprep.subr.mxu0 0.0
    %2095 = vmatpush1.msra.mxu0 0.0
    %2096 = vmatprep.subr.mxu0 0.0
    %2097 = vmatpush1.msra.mxu0 0.0
    %2098 = vmatprep.subr.mxu0 0.0
    %2099 = vmatpush1.msra.mxu0 0.0
    %2100 = vmatprep.subr.mxu0 %v190
    %2101 = vmatpush1.msra.mxu0 %v189
    %2102 = vmatprep.subr.mxu0 %v188
    %2103 = vmatpush1.msra.mxu0 %v187
    %2104 = vmatprep.subr.mxu0 %v186
    %2105 = vmatpush1.msra.mxu0 %v185
    %2106 = vmatprep.subr.mxu0 %v184
    %2107 = vmatpush1.msra.mxu0 %v183
    %2108 = vmatprep.subr.mxu0 0.0
    %2109 = vmatpush2.msra.mxu0 0.0
    %2110 = vmatprep.subr.mxu0 0.0
    %2111 = vmatpush2.msra.mxu0 0.0
    %2112 = vmatprep.subr.mxu0 0.0
    %2113 = vmatpush2.msra.mxu0 0.0
    %2114 = vmatprep.subr.mxu0 0.0
    %2115 = vmatpush2.msra.mxu0 0.0
    %2116 = vmatprep.subr.mxu0 0.0
    %2117 = vmatpush2.msra.mxu0 0.0
    %2118 = vmatprep.subr.mxu0 0.0
    %2119 = vmatpush2.msra.mxu0 0.0
    %2120 = vmatprep.subr.mxu0 0.0
    %2121 = vmatpush2.msra.mxu0 0.0
    %2122 = vmatprep.subr.mxu0 0.0
    %2123 = vmatpush2.msra.mxu0 0.0
    %2124 = vmatprep.subr.mxu0 0.0
    %2125 = vmatpush2.msra.mxu0 0.0
    %2126 = vmatprep.subr.mxu0 0.0
    %2127 = vmatpush2.msra.mxu0 0.0
    %2128 = vmatprep.subr.mxu0 0.0
    %2129 = vmatpush2.msra.mxu0 0.0
    %2130 = vmatprep.subr.mxu0 0.0
    %2131 = vmatpush2.msra.mxu0 0.0
    %2132 = vmatprep.subr.mxu0 0.0
    %2133 = vmatpush2.msra.mxu0 0.0
    %2134 = vmatprep.subr.mxu0 0.0
    %2135 = vmatpush2.msra.mxu0 0.0
    %2136 = vmatprep.subr.mxu0 0.0
    %2137 = vmatpush2.msra.mxu0 0.0
    %2138 = vmatprep.subr.mxu0 0.0
    %2139 = vmatpush2.msra.mxu0 0.0
    %2140 = vmatprep.mubr.f32.mxu0 0.0
    %2141 = vmatmul.mubr.f32.gmra.mxu0 %v2074
    %v2142 = vpop.f32.mrf.mxu0
    %v2143 = vadd.f32 %v256, %v2142
    %v2144 = vpop.f32.mrf.mxu0
    %2145 = vdwg.mxu0
    %vm2146 = vcmp.eq.s32.totalorder %v197, 7
    %v2147 = vlaneseq
    %v2148 = vshrl.u32 %v2147, 7
    %v2149 = vsub.s32 0, %v2148
    %v2150 = vrot.slane %v2143, %v2149
    %v2151 = vsel %vm2146, %v2150, %v1898
    %2152 = vst.msk [vmem:[#allocation11] sm:$0xff] %vm345, %v2151
    %vm2153 = vcmp.gt.f32.partialorder %v2151, 0.0
    %v2154 = vsel %vm2153, 1, 0
    %v2155 = vcvt.s32.f32 %v2154
    %2156 = vst.msk [vmem:[#allocation12] sm:$0xff] %vm345, %v2155
    // Predicated region
    $region50: #{tpu_custom_call.1} parent=1 // pred_check
      _
    $region51: #{tpu_custom_call.1} parent=1 // pred_check_branch
      %2158 = sbr.rel (0) target = $region53
    $region52: #{tpu_custom_call.1} parent=1 // pred_region
      %s2160 = ssub.s32 128, 128
      %2161 = vsyncadd [#allocation5], %s2160
      %s2163 = sshll.u32 [#allocation11], 4
      %s2164 = int_to_ptr.vmem [resolvable:$true] %s2163
      %2166 = dma.vmem_to_hbm [thread:$0]  %s2164, 128, %s8, [#allocation5]
    $region53: #{tpu_custom_call.1} parent=1 // pred_fallthru
      _
    // Predicated region
    $region54: #{tpu_custom_call.1} parent=1 // pred_check
      _
    $region55: #{tpu_custom_call.1} parent=1 // pred_check_branch
      %2168 = sbr.rel (0) target = $region57
    $region56: #{tpu_custom_call.1} parent=1 // pred_region
      %s2170 = ssub.s32 128, 128
      %2171 = vsyncadd [#allocation13], %s2170
      %s2173 = sshll.u32 [#allocation12], 4
      %s2174 = int_to_ptr.vmem [resolvable:$true] %s2173
      %2176 = dma.vmem_to_hbm [thread:$0]  %s2174, 128, %s9, [#allocation13]
    $region57: #{tpu_custom_call.1} parent=1 // pred_fallthru
      _
    // Predicated region
    $region58: #{tpu_custom_call.1} parent=1 // pred_check
      _
    $region59: #{tpu_custom_call.1} parent=1 // pred_check_branch
      %2178 = sbr.rel (0) target = $region61
    $region60: #{tpu_custom_call.1} parent=1 // pred_region
      %2179 = dma.done [#allocation5], 128
    $region61: #{tpu_custom_call.1} parent=1 // pred_fallthru
      _
    // Predicated region
    $region62: #{tpu_custom_call.1} parent=1 // pred_check
      _
    $region63: #{tpu_custom_call.1} parent=1 // pred_check_branch
      %2181 = sbr.rel (0) target = $region65
    $region64: #{tpu_custom_call.1} parent=1 // pred_region
      %2182 = dma.done [#allocation13], 128
    $region65: #{tpu_custom_call.1} parent=1 // pred_fallthru
      _
    %2183 = vsyncpa [#allocation4], 1
    %2184 = vsyncpa [#allocation7], 1
    %2185 = vsyncpa [#allocation10], 1
    %2186 = vsyncpa [#allocation5], 1
    %2187 = vsyncpa [#allocation13], 1

</llo_original>
